<compile_context>
chip_gen: v7x
topology: tpu7x:2x2x1
jax: 0.10.0
libtpu: 0.0.40
codegen_flags: <defaults>
</compile_context>

<pallas_src>
import math
import functools

import jax
import jax.numpy as jnp
from jax.experimental import pallas as pl
from jax.experimental.pallas import tpu as pltpu


# ----------------------------------------------------------------------------
# Helpers
# ----------------------------------------------------------------------------
def _round_up(x, m):
    return ((x + m - 1) // m) * m


def _pad_to(x, shape):
    pads = [(0, s - d) for d, s in zip(x.shape, shape)]
    return jnp.pad(x, pads)


# ----------------------------------------------------------------------------
# Glue: sinusoidal positional encoding (contiguous stack+reshape, no strided
# .at[0::2] scatters).
# ----------------------------------------------------------------------------
def sinusoidal_positional_encoding(positions, emb_dim, max_sequence_length):
    """positions: (L,) float32 -> (L, emb_dim) float32 interleaved sin/cos."""
    pos = positions - jnp.float32(max_sequence_length)
    half = emb_dim // 2
    div = jnp.exp(
        jnp.arange(half, dtype=jnp.float32) * (-math.log(10000.0) / half)
    )  # (half,)
    ang = pos[:, None] * div[None, :]                       # (L, half)
    pe = jnp.stack([jnp.sin(ang), jnp.cos(ang)], axis=-1)   # (L, half, 2)
    return pe.reshape(positions.shape[0], emb_dim)          # even=sin, odd=cos


# ----------------------------------------------------------------------------
# Pallas kernel: HyenaFilter implicit-filter MLP, transposed / lane-dense.
#   hT   = sin(W1^T @ t^T + b1^T)        (H_pad, TL)
#   outT = W2^T @ hT + b2^T              (O_pad, TL)
# ----------------------------------------------------------------------------
def hyena_filter_kernel(tT_ref, w1T_ref, b1T_ref, w2T_ref, b2T_ref, o_ref):
    # tT:  (E_pad, TL)      bf16   (L tile on lanes)
    # w1T: (H_pad, E_pad)   bf16
    # b1T: (H_pad, 1)       f32
    # w2T: (O_pad, H_pad)   bf16
    # b2T: (O_pad, 1)       f32
    # out: (O_pad, TL)      f32    (lane-dense store)
    h = jnp.dot(w1T_ref[...], tT_ref[...],
                preferred_element_type=jnp.float32)          # (H_pad, TL) f32
    h = jnp.sin(h + b1T_ref[...])                            # Siren act, f32
    h = h.astype(jnp.bfloat16)
    o = jnp.dot(w2T_ref[...], h,
                preferred_element_type=jnp.float32)          # (O_pad, TL) f32
    o_ref[...] = o + b2T_ref[...]


def hyena_filter_mlp(tT, w1T, b1T, w2T, b2T, *, tl):
    """tT:(E_pad, L_pad) bf16 -> (O_pad, L_pad) f32, tiled over L."""
    E_pad, L_pad = tT.shape
    H_pad = w1T.shape[0]
    O_pad = w2T.shape[0]
    assert L_pad % tl == 0

    flops = 2 * L_pad * E_pad * H_pad + 2 * L_pad * H_pad * O_pad
    bytes_accessed = (
        tT.size * 2 + w1T.size * 2 + w2T.size * 2
        + b1T.size * 4 + b2T.size * 4 + O_pad * L_pad * 4
    )

    return pl.pallas_call(
        hyena_filter_kernel,
        out_shape=jax.ShapeDtypeStruct((O_pad, L_pad), jnp.float32),
        grid=(L_pad // tl,),
        in_specs=[
            pl.BlockSpec((E_pad, tl), lambda i: (0, i)),    # t^T tile (L on lanes)
            pl.BlockSpec((H_pad, E_pad), lambda i: (0, 0)), # pinned weights
            pl.BlockSpec((H_pad, 1), lambda i: (0, 0)),
            pl.BlockSpec((O_pad, H_pad), lambda i: (0, 0)),
            pl.BlockSpec((O_pad, 1), lambda i: (0, 0)),
        ],
        out_specs=pl.BlockSpec((O_pad, tl), lambda i: (0, i)),
        compiler_params=pltpu.CompilerParams(
            dimension_semantics=("parallel",),
        ),
        cost_estimate=pl.CostEstimate(
            flops=flops,
            transcendentals=L_pad * H_pad,
            bytes_accessed=bytes_accessed,
        ),
    )(tT, w1T, b1T, w2T, b2T)


@functools.partial(jax.jit,
                   static_argnames=("tl", "n_order", "emb_dim", "seq_len"))
def generate_filters(tT, w1T, b1T, w2T, b2T, *, tl, n_order, emb_dim, seq_len):
    outT = hyena_filter_mlp(tT, w1T, b1T, w2T, b2T, tl=tl)   # (O_pad, L_pad)
    outT = outT[: n_order * emb_dim, :seq_len]               # drop pad
    return outT.reshape(n_order, emb_dim, seq_len)           # NCL per order


# ----------------------------------------------------------------------------
# Module wrapper
# ----------------------------------------------------------------------------
class RotaryHyenaFilter:
    def __init__(self, emb_dim, n_order, max_sequence_length=100, num_heads=4,
                 key=None):
        self.emb_dim = emb_dim
        self.n_order = n_order
        self.num_heads = num_heads  # TODO(synk): unused in this synthetic MLP
        self.max_sequence_length = max_sequence_length

        L = 2 * max_sequence_length + 1
        self.seq_len = L

        # --- positional-encoding table (frozen buffer) -----------------------
        positions = jnp.arange(0, L, dtype=jnp.float32)
        self.t = sinusoidal_positional_encoding(
            positions, emb_dim, max_sequence_length
        )  # (L, emb_dim) f32, non-trainable

        # --- padded / transposed layouts for the TPU kernel ------------------
        l_pad_min = _round_up(L, 128)
        self.tl = min(512, l_pad_min)            # L tile (lane dim per step)
        self.L_pad = _round_up(L, self.tl)

        hidden = emb_dim
        out_dim = n_order * emb_dim
        self.E_pad = _round_up(emb_dim, 16)      # bf16 sublane packing
        self.H_pad = _round_up(hidden, 128)
        self.O_pad = _round_up(out_dim, 128)

        t_pad = _pad_to(self.t, (self.L_pad, self.E_pad))    # zero-pad L & E
        self.tT = jnp.transpose(t_pad).astype(jnp.bfloat16)  # (E_pad, L_pad)

        # --- filter-generator MLP parameters (deterministic init) ------------
        if key is None:
            key = jax.random.PRNGKey(0)
        k1, k2, k3, k4 = jax.random.split(key, 4)
        s1 = 1.0 / math.sqrt(emb_dim)
        s2 = 1.0 / math.sqrt(hidden)
        self.w1 = jax.random.uniform(k1, (emb_dim, hidden), jnp.float32, -s1, s1)
        self.b1 = jax.random.uniform(k2, (1, hidden), jnp.float32, -s1, s1)
        self.w2 = jax.random.uniform(k3, (hidden, out_dim), jnp.float32, -s2, s2)
        self.b2 = jax.random.uniform(k4, (1, out_dim), jnp.float32, -s2, s2)

        # Padded, transposed, MXU-friendly copies (zero padding preserves math).
        self.w1T = _pad_to(jnp.transpose(self.w1),
                           (self.H_pad, self.E_pad)).astype(jnp.bfloat16)
        self.b1T = _pad_to(jnp.transpose(self.b1), (self.H_pad, 1))       # f32
        self.w2T = _pad_to(jnp.transpose(self.w2),
                           (self.O_pad, self.H_pad)).astype(jnp.bfloat16)
        self.b2T = _pad_to(jnp.transpose(self.b2), (self.O_pad, 1))       # f32

        self._filters = None   # parameters are frozen -> cache across forwards

    def __call__(self):
        if self._filters is None:
            out3 = generate_filters(
                self.tT, self.w1T, self.b1T, self.w2T, self.b2T,
                tl=self.tl, n_order=self.n_order,
                emb_dim=self.emb_dim, seq_len=self.seq_len,
            )  # (n_order, emb_dim, L)
            # List of n_order filters, each (1, emb_dim, L) -- PyTorch NCL.
            self._filters = [out3[i][None] for i in range(self.n_order)]
        return self._filters


# ----------------------------------------------------------------------------
# Reference (pure JAX, same bf16-in / f32-accumulate numerics as the kernel).
# ----------------------------------------------------------------------------
def reference_mlp(t, w1, b1, w2, b2):
    h = jnp.dot(t.astype(jnp.bfloat16), w1.astype(jnp.bfloat16),
                preferred_element_type=jnp.float32) + b1
    h = jnp.sin(h).astype(jnp.bfloat16)
    return jnp.dot(h, w2.astype(jnp.bfloat16),
                   preferred_element_type=jnp.float32) + b2


if __name__ == "__main__":
    emb_dim = 32
    n_order = 3
    max_seq = 8          # L = 2*8 + 1 = 17
    num_heads = 4

    mod = RotaryHyenaFilter(
        emb_dim, n_order, max_sequence_length=max_seq, num_heads=num_heads,
        key=jax.random.PRNGKey(0),
    )

    filters = mod()
    filters = [jax.block_until_ready(f) for f in filters]

    # correctness check against pure-JAX reference (matched bf16 numerics)
    ref = reference_mlp(mod.t, mod.w1, mod.b1, mod.w2, mod.b2)
    L = mod.t.shape[0]
    for i, f in enumerate(filters):
        assert f.shape == (1, emb_dim, L), f.shape
        ref_f = jnp.transpose(ref[:, i * emb_dim:(i + 1) * emb_dim])[None]
        err = float(jnp.max(jnp.abs(f - ref_f)))
        assert jnp.allclose(f, ref_f, atol=1e-2, rtol=1e-2), (i, err)

    # second call hits the cache (frozen params -> no recompute)
    _ = mod()

    print("KERNEL_OK")
</pallas_src>

<mosaic_0001>
module attributes {stable_mosaic.version = 11 : i64} {
  func.func @hyena_filter_kernel(%arg0: i32, %arg1: memref<32x128xbf16, #tpu.memory_space<vmem>>, %arg2: memref<128x32xbf16, #tpu.memory_space<vmem>>, %arg3: memref<128x1xf32, #tpu.memory_space<vmem>>, %arg4: memref<128x128xbf16, #tpu.memory_space<vmem>>, %arg5: memref<128x1xf32, #tpu.memory_space<vmem>>, %arg6: memref<128x128xf32, #tpu.memory_space<vmem>>) attributes {dimension_semantics = [#tpu.dimension_semantics<parallel>], iteration_bounds = array<i64: 1>, scalar_prefetch = 0 : i64, scratch_operands = 0 : i64, tpu.core_type = #tpu.core_type<tc>, window_params = [{transform_indices = @transform_0, window_bounds = array<i64: 32, 128>}, {pipeline_mode = #tpu.pipeline_mode<synchronous>, transform_indices = @transform_1, window_bounds = array<i64: 128, 32>}, {pipeline_mode = #tpu.pipeline_mode<synchronous>, transform_indices = @transform_2, window_bounds = array<i64: 128, 1>}, {pipeline_mode = #tpu.pipeline_mode<synchronous>, transform_indices = @transform_3, window_bounds = array<i64: 128, 128>}, {pipeline_mode = #tpu.pipeline_mode<synchronous>, transform_indices = @transform_4, window_bounds = array<i64: 128, 1>}, {transform_indices = @transform_5, window_bounds = array<i64: 128, 128>}]} {
    %c0 = arith.constant 0 : index
    %c0_0 = arith.constant 0 : index
    %0 = vector.load %arg2[%c0, %c0_0] : memref<128x32xbf16, #tpu.memory_space<vmem>>, vector<128x32xbf16>
    %c0_1 = arith.constant 0 : index
    %c0_2 = arith.constant 0 : index
    %1 = vector.load %arg1[%c0_1, %c0_2] : memref<32x128xbf16, #tpu.memory_space<vmem>>, vector<32x128xbf16>
    %cst = arith.constant dense<0.000000e+00> : vector<128x128xf32>
    %2 = tpu.matmul %0, %1, %cst {dimension_numbers = #tpu.dot_dimension_numbers<[1], [0], [0], [1], [0, 0, 1, 1], [], []>} : vector<128x32xbf16>, vector<32x128xbf16>, vector<128x128xf32> -> vector<128x128xf32>
    %c0_3 = arith.constant 0 : index
    %c0_4 = arith.constant 0 : index
    %3 = vector.load %arg3[%c0_3, %c0_4] : memref<128x1xf32, #tpu.memory_space<vmem>>, vector<128x1xf32>
    %4 = vector.broadcast %3 : vector<128x1xf32> to vector<128x128xf32>
    %5 = arith.addf %2, %4 : vector<128x128xf32>
    %6 = math.sin %5 : vector<128x128xf32>
    %7 = arith.truncf %6 : vector<128x128xf32> to vector<128x128xbf16>
    %c0_5 = arith.constant 0 : index
    %c0_6 = arith.constant 0 : index
    %8 = vector.load %arg4[%c0_5, %c0_6] : memref<128x128xbf16, #tpu.memory_space<vmem>>, vector<128x128xbf16>
    %cst_7 = arith.constant dense<0.000000e+00> : vector<128x128xf32>
    %9 = tpu.matmul %8, %7, %cst_7 {dimension_numbers = #tpu.dot_dimension_numbers<[1], [0], [0], [1], [0, 0, 1, 1], [], []>} : vector<128x128xbf16>, vector<128x128xbf16>, vector<128x128xf32> -> vector<128x128xf32>
    %c0_8 = arith.constant 0 : index
    %c0_9 = arith.constant 0 : index
    %10 = vector.load %arg5[%c0_8, %c0_9] : memref<128x1xf32, #tpu.memory_space<vmem>>, vector<128x1xf32>
    %11 = vector.broadcast %10 : vector<128x1xf32> to vector<128x128xf32>
    %12 = arith.addf %9, %11 : vector<128x128xf32>
    %c0_10 = arith.constant 0 : index
    %c0_11 = arith.constant 0 : index
    %13 = vector.load %arg6[%c0_10, %c0_11] : memref<128x128xf32, #tpu.memory_space<vmem>>, vector<128x128xf32>
    tpu.vector_store %arg6[%c0_10, %c0_11], %12 {strides = array<i32>} : memref<128x128xf32, #tpu.memory_space<vmem>>, vector<128x128xf32>,
    return
  }
  func.func @transform_0(%arg0: i32) -> (i32, i32) {
    %c0_i32 = arith.constant 0 : i32
    %c0_i32_0 = arith.constant 0 : i32
    return %c0_i32, %arg0 : i32, i32
  }
  func.func @transform_1(%arg0: i32) -> (i32, i32) {
    %c0_i32 = arith.constant 0 : i32
    %c0_i32_0 = arith.constant 0 : i32
    %c0_i32_1 = arith.constant 0 : i32
    return %c0_i32, %c0_i32_0 : i32, i32
  }
  func.func @transform_2(%arg0: i32) -> (i32, i32) {
    %c0_i32 = arith.constant 0 : i32
    %c0_i32_0 = arith.constant 0 : i32
    %c0_i32_1 = arith.constant 0 : i32
    return %c0_i32, %c0_i32_0 : i32, i32
  }
  func.func @transform_3(%arg0: i32) -> (i32, i32) {
    %c0_i32 = arith.constant 0 : i32
    %c0_i32_0 = arith.constant 0 : i32
    %c0_i32_1 = arith.constant 0 : i32
    return %c0_i32, %c0_i32_0 : i32, i32
  }
  func.func @transform_4(%arg0: i32) -> (i32, i32) {
    %c0_i32 = arith.constant 0 : i32
    %c0_i32_0 = arith.constant 0 : i32
    %c0_i32_1 = arith.constant 0 : i32
    return %c0_i32, %c0_i32_0 : i32, i32
  }
  func.func @transform_5(%arg0: i32) -> (i32, i32) {
    %c0_i32 = arith.constant 0 : i32
    %c0_i32_0 = arith.constant 0 : i32
    return %c0_i32, %arg0 : i32, i32
  }
}

</mosaic_0001>

<llo_original>
// kernel: generate_filters.1
$region0: #{generate_filters.1}
  #allocation0 [shape = 'u32[]', space=smem, size = 0x4, offset = 0x4, fixed_abs, tag = 'smem constant byte address 0x4 - core index']
  #allocation1 [shape = 'u32[144,128]{1,0:T(1,128)}', space=vmem, size = 0x12000, scoped, tag = 'internal scratch']
  %s0 = inlined_call_operand.vmem [shape: bf16[32,128], index: 0, kind: input, shape index: {}]
  %s1 = inlined_call_operand.vmem [shape: bf16[128,32], index: 1, kind: input, shape index: {}]
  %s2 = inlined_call_operand.vmem [shape: f32[128,1], index: 2, kind: input, shape index: {}]
  %s3 = inlined_call_operand.vmem [shape: bf16[128,128], index: 3, kind: input, shape index: {}]
  %s4 = inlined_call_operand.vmem [shape: f32[128,1], index: 4, kind: input, shape index: {}]
  %s5 = inlined_call_operand.vmem [shape: f32[128,128], index: 5, kind: output, shape index: {}]
  %s6 = sld [smem:[#allocation0]]
  $region30: #{generate_filters.1} parent=0
    _
  %s8 = ssub.s32 1, %s6
  %s9 = scalar_select 0, %s8, %s6
  // Predicated region
  $region2: #{generate_filters.1} parent=0 // pred_check
    _
  $region3: #{generate_filters.1} parent=0 // pred_check_branch
    %11 = sbr.rel (0) target = $region5
  $region4: #{generate_filters.1} parent=0 // pred_region
    _
  $region5: #{generate_filters.1} parent=0 // pred_fallthru
    _
  // Predicated region
  $region6: #{generate_filters.1} parent=0 // pred_check
    _
  $region7: #{generate_filters.1} parent=0 // pred_check_branch
    %13 = sbr.rel (0) target = $region9
  $region8: #{generate_filters.1} parent=0 // pred_region
    _
  $region9: #{generate_filters.1} parent=0 // pred_fallthru
    _
  // Predicated region
  $region10: #{generate_filters.1} parent=0 // pred_check
    _
  $region11: #{generate_filters.1} parent=0 // pred_check_branch
    %15 = sbr.rel (0) target = $region13
  $region12: #{generate_filters.1} parent=0 // pred_region
    _
  $region13: #{generate_filters.1} parent=0 // pred_fallthru
    _
  // Predicated region
  $region14: #{generate_filters.1} parent=0 // pred_check
    _
  $region15: #{generate_filters.1} parent=0 // pred_check_branch
    %17 = sbr.rel (0) target = $region17
  $region16: #{generate_filters.1} parent=0 // pred_region
    _
  $region17: #{generate_filters.1} parent=0 // pred_fallthru
    _
  // Predicated region
  $region18: #{generate_filters.1} parent=0 // pred_check
    _
  $region19: #{generate_filters.1} parent=0 // pred_check_branch
    %19 = sbr.rel (0) target = $region21
  $region20: #{generate_filters.1} parent=0 // pred_region
    _
  $region21: #{generate_filters.1} parent=0 // pred_fallthru
    _
  %v21 = vld [vmem:[%s1] sm:$0xf]
  %v22 = vld [vmem:[%s1 + $0x4] sm:$0xf]
  %v23 = vld [vmem:[%s1 + $0x8] sm:$0xf]
  %v24 = vld [vmem:[%s1 + $0xc] sm:$0xf]
  %v25 = vld [vmem:[%s1 + $0x10] sm:$0xf]
  %v26 = vld [vmem:[%s1 + $0x14] sm:$0xf]
  %v27 = vld [vmem:[%s1 + $0x18] sm:$0xf]
  %v28 = vld [vmem:[%s1 + $0x1c] sm:$0xf]
  %v29 = vld [vmem:[%s1 + $0x20] sm:$0xf]
  %v30 = vld [vmem:[%s1 + $0x24] sm:$0xf]
  %v31 = vld [vmem:[%s1 + $0x28] sm:$0xf]
  %v32 = vld [vmem:[%s1 + $0x2c] sm:$0xf]
  %v33 = vld [vmem:[%s1 + $0x30] sm:$0xf]
  %v34 = vld [vmem:[%s1 + $0x34] sm:$0xf]
  %v35 = vld [vmem:[%s1 + $0x38] sm:$0xf]
  %v36 = vld [vmem:[%s1 + $0x3c] sm:$0xf]
  %v37 = vld [vmem:[%s0] sm:$0xf]
  %v38 = vld [vmem:[%s0 + $0x4] sm:$0xf]
  %v39 = vld [vmem:[%s0 + $0x8] sm:$0xf]
  %v40 = vld [vmem:[%s0 + $0xc] sm:$0xf]
  %v41 = vld [vmem:[%s2] sm:$0xff]
  %v42 = vld [vmem:[%s2 + $0x8] sm:$0xff]
  %v43 = vld [vmem:[%s2 + $0x10] sm:$0xff]
  %v44 = vld [vmem:[%s2 + $0x18] sm:$0xff]
  %v45 = vld [vmem:[%s2 + $0x20] sm:$0xff]
  %v46 = vld [vmem:[%s2 + $0x28] sm:$0xff]
  %v47 = vld [vmem:[%s2 + $0x30] sm:$0xff]
  %v48 = vld [vmem:[%s2 + $0x38] sm:$0xff]
  %v49 = vld [vmem:[%s2 + $0x40] sm:$0xff]
  %v50 = vld [vmem:[%s2 + $0x48] sm:$0xff]
  %v51 = vld [vmem:[%s2 + $0x50] sm:$0xff]
  %v52 = vld [vmem:[%s2 + $0x58] sm:$0xff]
  %v53 = vld [vmem:[%s2 + $0x60] sm:$0xff]
  %v54 = vld [vmem:[%s2 + $0x68] sm:$0xff]
  %v55 = vld [vmem:[%s2 + $0x70] sm:$0xff]
  %v56 = vld [vmem:[%s2 + $0x78] sm:$0xff]
  %58 = vset.pattern.permute.xlu0 0
  %59 = vperm.xlu0 %58, %v41
  %v60 = vpop.permute.xlu0 %59
  %63 = vset.pattern.permute.xlu0 0
  %64 = vperm.xlu0 %63, %v42
  %v65 = vpop.permute.xlu0 %64
  %68 = vset.pattern.permute.xlu0 0
  %69 = vperm.xlu0 %68, %v43
  %v70 = vpop.permute.xlu0 %69
  %73 = vset.pattern.permute.xlu0 0
  %74 = vperm.xlu0 %73, %v44
  %v75 = vpop.permute.xlu0 %74
  %78 = vset.pattern.permute.xlu0 0
  %79 = vperm.xlu0 %78, %v45
  %v80 = vpop.permute.xlu0 %79
  %83 = vset.pattern.permute.xlu0 0
  %84 = vperm.xlu0 %83, %v46
  %v85 = vpop.permute.xlu0 %84
  %88 = vset.pattern.permute.xlu0 0
  %89 = vperm.xlu0 %88, %v47
  %v90 = vpop.permute.xlu0 %89
  %93 = vset.pattern.permute.xlu0 0
  %94 = vperm.xlu0 %93, %v48
  %v95 = vpop.permute.xlu0 %94
  %98 = vset.pattern.permute.xlu0 0
  %99 = vperm.xlu0 %98, %v49
  %v100 = vpop.permute.xlu0 %99
  %103 = vset.pattern.permute.xlu0 0
  %104 = vperm.xlu0 %103, %v50
  %v105 = vpop.permute.xlu0 %104
  %108 = vset.pattern.permute.xlu0 0
  %109 = vperm.xlu0 %108, %v51
  %v110 = vpop.permute.xlu0 %109
  %113 = vset.pattern.permute.xlu0 0
  %114 = vperm.xlu0 %113, %v52
  %v115 = vpop.permute.xlu0 %114
  %118 = vset.pattern.permute.xlu0 0
  %119 = vperm.xlu0 %118, %v53
  %v120 = vpop.permute.xlu0 %119
  %123 = vset.pattern.permute.xlu0 0
  %124 = vperm.xlu0 %123, %v54
  %v125 = vpop.permute.xlu0 %124
  %128 = vset.pattern.permute.xlu0 0
  %129 = vperm.xlu0 %128, %v55
  %v130 = vpop.permute.xlu0 %129
  %133 = vset.pattern.permute.xlu0 0
  %134 = vperm.xlu0 %133, %v56
  %v135 = vpop.permute.xlu0 %134
  %v153 = vunpack.c.l.b16 %v21
  %v154 = vunpack.c.l.b16 %v22
  %v155 = vunpack.c.l.b16 %v23
  %v156 = vunpack.c.l.b16 %v24
  %v157 = vunpack.c.l.b16 %v25
  %v158 = vunpack.c.l.b16 %v26
  %v159 = vunpack.c.l.b16 %v27
  %v160 = vunpack.c.l.b16 %v28
  %v161 = vunpack.c.l.b16 %v29
  %v162 = vunpack.c.l.b16 %v30
  %v163 = vunpack.c.l.b16 %v31
  %v164 = vunpack.c.l.b16 %v32
  %v165 = vunpack.c.l.b16 %v33
  %v166 = vunpack.c.l.b16 %v34
  %v167 = vunpack.c.l.b16 %v35
  %v168 = vunpack.c.l.b16 %v36
  %v169 = vpack.c.b16 %v154, %v153
  %v170 = vpack.c.b16 %v156, %v155
  %v171 = vpack.c.b16 %v158, %v157
  %v172 = vpack.c.b16 %v160, %v159
  %v173 = vpack.c.b16 %v162, %v161
  %v174 = vpack.c.b16 %v164, %v163
  %v175 = vpack.c.b16 %v166, %v165
  %v176 = vpack.c.b16 %v168, %v167
  %v181 = vunpack.c.l.b16 %v37
  %v182 = vunpack.c.l.b16 %v38
  %v183 = vunpack.c.l.b16 %v39
  %v184 = vunpack.c.l.b16 %v40
  %v185 = vpack.c.b16 %v182, %v181
  %v186 = vpack.c.b16 %v184, %v183
  %vm189 = vcmask 261120
  %v191 = vsel %vm189, %v169, 0
  %v194 = vsel %vm189, %v170, 0
  %v197 = vsel %vm189, %v171, 0
  %v200 = vsel %vm189, %v172, 0
  %v203 = vsel %vm189, %v173, 0
  %v206 = vsel %vm189, %v174, 0
  %v209 = vsel %vm189, %v175, 0
  %v212 = vsel %vm189, %v176, 0
  %214 = vmatprep.subr.bf16.mxu0 0
  %215 = vmatpush1.bf16.msra.mxu0 %v185
  %216 = vmatprep.subr.bf16.mxu0 0
  %217 = vmatpush1.bf16.msra.mxu0 %v186
  %218 = vmatprep.subr.bf16.mxu0 0
  %219 = vmatpush1.bf16.msra.mxu0 0
  %220 = vmatprep.subr.bf16.mxu0 0
  %221 = vmatpush1.bf16.msra.mxu0 0
  %222 = vmatprep.subr.bf16.mxu0 0
  %223 = vmatpush1.bf16.msra.mxu0 0
  %224 = vmatprep.subr.bf16.mxu0 0
  %225 = vmatpush1.bf16.msra.mxu0 0
  %226 = vmatprep.subr.bf16.mxu0 0
  %227 = vmatpush1.bf16.msra.mxu0 0
  %228 = vmatprep.subr.bf16.mxu0 0
  %229 = vmatpush1.bf16.msra.mxu0 0
  %230 = vmatprep.subr.bf16.mxu0 0
  %231 = vmatpush1.bf16.msra.mxu0 0
  %232 = vmatprep.subr.bf16.mxu0 0
  %233 = vmatpush1.bf16.msra.mxu0 0
  %234 = vmatprep.subr.bf16.mxu0 0
  %235 = vmatpush1.bf16.msra.mxu0 0
  %236 = vmatprep.subr.bf16.mxu0 0
  %237 = vmatpush1.bf16.msra.mxu0 0
  %238 = vmatprep.subr.bf16.mxu0 0
  %239 = vmatpush1.bf16.msra.mxu0 0
  %240 = vmatprep.subr.bf16.mxu0 0
  %241 = vmatpush1.bf16.msra.mxu0 0
  %242 = vmatprep.subr.bf16.mxu0 0
  %243 = vmatpush1.bf16.msra.mxu0 0
  %244 = vmatprep.subr.bf16.mxu0 0
  %245 = vmatpush1.bf16.msra.mxu0 0
  %246 = vmatprep.mubr.bf16.mxu0 0
  %247 = vmatmul.mubr.bf16.gmra.mrb[0].mxu0 %v191
  %v248 = vpop.f32.mrb[0].mxu0
  %v249 = vadd.f32 %v60, %v248
  %v250 = vpop.f32.mrb[0].mxu0
  %v251 = vpop.f32.mrb[0].mxu0
  %v252 = vadd.f32 %v65, %v251
  %v253 = vpop.f32.mrb[0].mxu0
  %254 = vmatprep.mubr.bf16.mxu0 0
  %255 = vmatmul.mubr.bf16.gmra.mrb[0].mxu0 %v194
  %v256 = vpop.f32.mrb[0].mxu0
  %v257 = vadd.f32 %v70, %v256
  %v258 = vpop.f32.mrb[0].mxu0
  %v259 = vpop.f32.mrb[0].mxu0
  %v260 = vadd.f32 %v75, %v259
  %v261 = vpop.f32.mrb[0].mxu0
  %262 = vmatprep.mubr.bf16.mxu0 0
  %263 = vmatmul.mubr.bf16.gmra.mrb[0].mxu0 %v197
  %v264 = vpop.f32.mrb[0].mxu0
  %v265 = vadd.f32 %v80, %v264
  %v266 = vpop.f32.mrb[0].mxu0
  %v267 = vpop.f32.mrb[0].mxu0
  %v268 = vadd.f32 %v85, %v267
  %v269 = vpop.f32.mrb[0].mxu0
  %270 = vmatprep.mubr.bf16.mxu0 0
  %271 = vmatmul.mubr.bf16.gmra.mrb[0].mxu0 %v200
  %v272 = vpop.f32.mrb[0].mxu0
  %v273 = vadd.f32 %v90, %v272
  %v274 = vpop.f32.mrb[0].mxu0
  %v275 = vpop.f32.mrb[0].mxu0
  %v276 = vadd.f32 %v95, %v275
  %v277 = vpop.f32.mrb[0].mxu0
  %278 = vmatprep.mubr.bf16.mxu0 0
  %279 = vmatmul.mubr.bf16.gmra.mrb[0].mxu0 %v203
  %v280 = vpop.f32.mrb[0].mxu0
  %v281 = vadd.f32 %v100, %v280
  %v282 = vpop.f32.mrb[0].mxu0
  %v283 = vpop.f32.mrb[0].mxu0
  %v284 = vadd.f32 %v105, %v283
  %v285 = vpop.f32.mrb[0].mxu0
  %286 = vmatprep.mubr.bf16.mxu0 0
  %287 = vmatmul.mubr.bf16.gmra.mrb[0].mxu0 %v206
  %v288 = vpop.f32.mrb[0].mxu0
  %v289 = vadd.f32 %v110, %v288
  %v290 = vpop.f32.mrb[0].mxu0
  %v291 = vpop.f32.mrb[0].mxu0
  %v292 = vadd.f32 %v115, %v291
  %v293 = vpop.f32.mrb[0].mxu0
  %294 = vmatprep.mubr.bf16.mxu0 0
  %295 = vmatmul.mubr.bf16.gmra.mrb[0].mxu0 %v209
  %v296 = vpop.f32.mrb[0].mxu0
  %v297 = vadd.f32 %v120, %v296
  %v298 = vpop.f32.mrb[0].mxu0
  %v299 = vpop.f32.mrb[0].mxu0
  %v300 = vadd.f32 %v125, %v299
  %v301 = vpop.f32.mrb[0].mxu0
  %302 = vmatprep.mubr.bf16.mxu0 0
  %303 = vmatmul.mubr.bf16.gmra.mrb[0].mxu0 %v212
  %v304 = vpop.f32.mrb[0].mxu0
  %v305 = vadd.f32 %v130, %v304
  %v306 = vpop.f32.mrb[0].mxu0
  %v307 = vpop.f32.mrb[0].mxu0
  %v308 = vadd.f32 %v135, %v307
  %v309 = vpop.f32.mrb[0].mxu0
  %310 = vdwg.mxu0
  %v311 = vand.u32 2147483647, %v249
  %vm312 = vcmp.le.f32.partialorder %v311, 0.7853982
  %vm313 = vcmp.lt.s32.totalorder %v249, 0
  %v314 = vand.u32 %v249, 2139095040
  %v315 = vshrl.u32 %v314, 23
  %v316 = vsub.s32 %v315, 127
  %v317 = vand.u32 2147483647, %v249
  %v318 = vand.u32 %v317, 8388607
  %v319 = vor.u32 %v318, 8388608
  %v320 = vsub.s32 0, %v319
  %v321 = vadd.s32 %v316, 1
  %vm322 = vcmp.gt.s32.totalorder %v321, 0
  %v323 = vsel %vm322, %v321, 0
  %v324 = vshrl.u32 %v323, 5
  %v325 = vand.u32 %v323, 31
  %v326 = vsub.s32 32, %v325
  %v327 = vshrl.u32 683565275, %v326
  %v328 = vshll.u32 683565275, %v325
  %v329 = vshrl.u32 2475754826, %v326
  %v330 = vor.u32 %v328, %v329
  %v331 = vshll.u32 2475754826, %v325
  %v332 = vshrl.u32 2131351028, %v326
  %v333 = vor.u32 %v331, %v332
  %v334 = vshll.u32 2131351028, %v325
  %v335 = vshrl.u32 2102212464, %v326
  %v336 = vor.u32 %v334, %v335
  %v337 = vshll.u32 2102212464, %v325
  %v338 = vshrl.u32 920167782, %v326
  %v339 = vor.u32 %v337, %v338
  %v340 = vshll.u32 920167782, %v325
  %v341 = vshrl.u32 1326507024, %v326
  %v342 = vor.u32 %v340, %v341
  %vm343 = vcmp.lt.s32.totalorder %v324, 1
  %vm344 = vcmp.lt.s32.totalorder %v324, 2
  %vm345 = vcmp.lt.s32.totalorder %v324, 3
  %vm346 = vcmp.lt.s32.totalorder %v324, 4
  %v347 = vsel %vm343, %v327, %v330
  %v348 = vsel %vm346, %v336, 2102212464
  %v349 = vsel %vm345, %v333, %v348
  %v350 = vsel %vm344, %v347, %v349
  %v351 = vsel %vm343, %v330, %v333
  %v352 = vsel %vm346, %v339, 920167782
  %v353 = vsel %vm345, %v336, %v352
  %v354 = vsel %vm344, %v351, %v353
  %v355 = vsel %vm343, %v333, %v336
  %v356 = vsel %vm346, %v342, 1326507024
  %v357 = vsel %vm345, %v339, %v356
  %v358 = vsel %vm344, %v355, %v357
  %v359 = vshll.u32 %v319, 8
  %v360 = vmul.u32.u64.compose %v359, %v358
  %v361 = vextract.low.u32 %v360
  %v362 = vextract.high.u32 %v360
  %v363 = vmul.u32.u64.compose %v359, %v354
  %v364 = vextract.low.u32 %v363
  %v365 = vextract.high.u32 %v363
  %v366 = vmul.u32 %v359, %v350
  %v367 = vadd.s32 %v362, %v364
  %vm368 = vc.u32 %v362, %v364
  %v369 = vadd.s32 %v365, 1
  %v370 = vsel %vm368, %v369, %v365
  %v371 = vadd.s32 %v366, %v370
  %v372 = vadd.s32 %v371, 536870912
  %v373 = vshrl.u32 %v372, 30
  %v374 = vshll.u32 %v373, 30
  %v375 = vsub.s32 %v371, %v374
  %vm376 = vcmp.lt.s32.totalorder %v375, 0
  %v377 = vsub.s32 0, %v375
  %v378 = vsel %vm376, %v377, %v375
  %v379 = vclz %v378
  %v380 = vsub.s32 %v379, 2
  %vm381 = vcmp.gt.s32.totalorder 0, %v380
  %v382 = vsel %vm381, 0, %v380
  %v383 = vsub.s32 32, %v382
  %v384 = vshll.u32 %v375, %v382
  %v385 = vshrl.u32 %v367, %v383
  %v386 = vor.u32 %v384, %v385
  %v387 = vsub.s32 4294967266, %v382
  %v388 = vadd.s32 %v387, 127
  %v389 = vshll.u32 %v388, 23
  %v390 = vor.u32 4788187, %v389
  %v391 = vand.u32 2147483647, %v390
  %v393 = vcvt.s32.f32 %v386
  %v394 = vmul.f32 %v393, %v391
  %v395 = vxor.u32 %v394, 2147483648
  %v396 = vsel %vm313, %v395, %v394
  %v397 = vsub.s32 4, %v373
  %v398 = vsel %vm313, %v397, %v373
  %v399 = vsel %vm312, %v249, %v396
  %v400 = vsel %vm312, 0, %v398
  %v401 = vcosq.f32.pop %v399
  %v402 = vsinq.f32.pop %v399
  %vm403 = vweird.f32 %v249
  %v404 = vadd.s32 %v400, 3
  %v405 = vand.u32 %v404, 3
  %vm406 = vcmp.lt.s32.totalorder %v405, 2
  %vm407 = vcmp.eq.s32.totalorder %v405, 0
  %v408 = vxor.u32 %v402, 2147483648
  %v409 = vsel %vm407, %v401, %v408
  %vm410 = vcmp.eq.s32.totalorder %v405, 2
  %v411 = vxor.u32 %v401, 2147483648
  %v412 = vsel %vm410, %v411, %v402
  %v413 = vsel %vm406, %v409, %v412
  %v414 = vsel %vm403, nan, %v413
  %v415 = vand.u32 2147483647, %v252
  %vm416 = vcmp.le.f32.partialorder %v415, 0.7853982
  %vm417 = vcmp.lt.s32.totalorder %v252, 0
  %v418 = vand.u32 %v252, 2139095040
  %v419 = vshrl.u32 %v418, 23
  %v420 = vsub.s32 %v419, 127
  %v421 = vand.u32 2147483647, %v252
  %v422 = vand.u32 %v421, 8388607
  %v423 = vor.u32 %v422, 8388608
  %v424 = vsub.s32 0, %v423
  %v425 = vadd.s32 %v420, 1
  %vm426 = vcmp.gt.s32.totalorder %v425, 0
  %v427 = vsel %vm426, %v425, 0
  %v428 = vshrl.u32 %v427, 5
  %v429 = vand.u32 %v427, 31
  %v430 = vsub.s32 32, %v429
  %v431 = vshrl.u32 683565275, %v430
  %v432 = vshll.u32 683565275, %v429
  %v433 = vshrl.u32 2475754826, %v430
  %v434 = vor.u32 %v432, %v433
  %v435 = vshll.u32 2475754826, %v429
  %v436 = vshrl.u32 2131351028, %v430
  %v437 = vor.u32 %v435, %v436
  %v438 = vshll.u32 2131351028, %v429
  %v439 = vshrl.u32 2102212464, %v430
  %v440 = vor.u32 %v438, %v439
  %v441 = vshll.u32 2102212464, %v429
  %v442 = vshrl.u32 920167782, %v430
  %v443 = vor.u32 %v441, %v442
  %v444 = vshll.u32 920167782, %v429
  %v445 = vshrl.u32 1326507024, %v430
  %v446 = vor.u32 %v444, %v445
  %vm447 = vcmp.lt.s32.totalorder %v428, 1
  %vm448 = vcmp.lt.s32.totalorder %v428, 2
  %vm449 = vcmp.lt.s32.totalorder %v428, 3
  %vm450 = vcmp.lt.s32.totalorder %v428, 4
  %v451 = vsel %vm447, %v431, %v434
  %v452 = vsel %vm450, %v440, 2102212464
  %v453 = vsel %vm449, %v437, %v452
  %v454 = vsel %vm448, %v451, %v453
  %v455 = vsel %vm447, %v434, %v437
  %v456 = vsel %vm450, %v443, 920167782
  %v457 = vsel %vm449, %v440, %v456
  %v458 = vsel %vm448, %v455, %v457
  %v459 = vsel %vm447, %v437, %v440
  %v460 = vsel %vm450, %v446, 1326507024
  %v461 = vsel %vm449, %v443, %v460
  %v462 = vsel %vm448, %v459, %v461
  %v463 = vshll.u32 %v423, 8
  %v464 = vmul.u32.u64.compose %v463, %v462
  %v465 = vextract.low.u32 %v464
  %v466 = vextract.high.u32 %v464
  %v467 = vmul.u32.u64.compose %v463, %v458
  %v468 = vextract.low.u32 %v467
  %v469 = vextract.high.u32 %v467
  %v470 = vmul.u32 %v463, %v454
  %v471 = vadd.s32 %v466, %v468
  %vm472 = vc.u32 %v466, %v468
  %v473 = vadd.s32 %v469, 1
  %v474 = vsel %vm472, %v473, %v469
  %v475 = vadd.s32 %v470, %v474
  %v476 = vadd.s32 %v475, 536870912
  %v477 = vshrl.u32 %v476, 30
  %v478 = vshll.u32 %v477, 30
  %v479 = vsub.s32 %v475, %v478
  %vm480 = vcmp.lt.s32.totalorder %v479, 0
  %v481 = vsub.s32 0, %v479
  %v482 = vsel %vm480, %v481, %v479
  %v483 = vclz %v482
  %v484 = vsub.s32 %v483, 2
  %vm485 = vcmp.gt.s32.totalorder 0, %v484
  %v486 = vsel %vm485, 0, %v484
  %v487 = vsub.s32 32, %v486
  %v488 = vshll.u32 %v479, %v486
  %v489 = vshrl.u32 %v471, %v487
  %v490 = vor.u32 %v488, %v489
  %v491 = vsub.s32 4294967266, %v486
  %v492 = vadd.s32 %v491, 127
  %v493 = vshll.u32 %v492, 23
  %v494 = vor.u32 4788187, %v493
  %v495 = vand.u32 2147483647, %v494
  %v497 = vcvt.s32.f32 %v490
  %v498 = vmul.f32 %v497, %v495
  %v499 = vxor.u32 %v498, 2147483648
  %v500 = vsel %vm417, %v499, %v498
  %v501 = vsub.s32 4, %v477
  %v502 = vsel %vm417, %v501, %v477
  %v503 = vsel %vm416, %v252, %v500
  %v504 = vsel %vm416, 0, %v502
  %v505 = vcosq.f32.pop %v503
  %v506 = vsinq.f32.pop %v503
  %vm507 = vweird.f32 %v252
  %v508 = vadd.s32 %v504, 3
  %v509 = vand.u32 %v508, 3
  %vm510 = vcmp.lt.s32.totalorder %v509, 2
  %vm511 = vcmp.eq.s32.totalorder %v509, 0
  %v512 = vxor.u32 %v506, 2147483648
  %v513 = vsel %vm511, %v505, %v512
  %vm514 = vcmp.eq.s32.totalorder %v509, 2
  %v515 = vxor.u32 %v505, 2147483648
  %v516 = vsel %vm514, %v515, %v506
  %v517 = vsel %vm510, %v513, %v516
  %v518 = vsel %vm507, nan, %v517
  %v519 = vand.u32 2147483647, %v257
  %vm520 = vcmp.le.f32.partialorder %v519, 0.7853982
  %vm521 = vcmp.lt.s32.totalorder %v257, 0
  %v522 = vand.u32 %v257, 2139095040
  %v523 = vshrl.u32 %v522, 23
  %v524 = vsub.s32 %v523, 127
  %v525 = vand.u32 2147483647, %v257
  %v526 = vand.u32 %v525, 8388607
  %v527 = vor.u32 %v526, 8388608
  %v528 = vsub.s32 0, %v527
  %v529 = vadd.s32 %v524, 1
  %vm530 = vcmp.gt.s32.totalorder %v529, 0
  %v531 = vsel %vm530, %v529, 0
  %v532 = vshrl.u32 %v531, 5
  %v533 = vand.u32 %v531, 31
  %v534 = vsub.s32 32, %v533
  %v535 = vshrl.u32 683565275, %v534
  %v536 = vshll.u32 683565275, %v533
  %v537 = vshrl.u32 2475754826, %v534
  %v538 = vor.u32 %v536, %v537
  %v539 = vshll.u32 2475754826, %v533
  %v540 = vshrl.u32 2131351028, %v534
  %v541 = vor.u32 %v539, %v540
  %v542 = vshll.u32 2131351028, %v533
  %v543 = vshrl.u32 2102212464, %v534
  %v544 = vor.u32 %v542, %v543
  %v545 = vshll.u32 2102212464, %v533
  %v546 = vshrl.u32 920167782, %v534
  %v547 = vor.u32 %v545, %v546
  %v548 = vshll.u32 920167782, %v533
  %v549 = vshrl.u32 1326507024, %v534
  %v550 = vor.u32 %v548, %v549
  %vm551 = vcmp.lt.s32.totalorder %v532, 1
  %vm552 = vcmp.lt.s32.totalorder %v532, 2
  %vm553 = vcmp.lt.s32.totalorder %v532, 3
  %vm554 = vcmp.lt.s32.totalorder %v532, 4
  %v555 = vsel %vm551, %v535, %v538
  %v556 = vsel %vm554, %v544, 2102212464
  %v557 = vsel %vm553, %v541, %v556
  %v558 = vsel %vm552, %v555, %v557
  %v559 = vsel %vm551, %v538, %v541
  %v560 = vsel %vm554, %v547, 920167782
  %v561 = vsel %vm553, %v544, %v560
  %v562 = vsel %vm552, %v559, %v561
  %v563 = vsel %vm551, %v541, %v544
  %v564 = vsel %vm554, %v550, 1326507024
  %v565 = vsel %vm553, %v547, %v564
  %v566 = vsel %vm552, %v563, %v565
  %v567 = vshll.u32 %v527, 8
  %v568 = vmul.u32.u64.compose %v567, %v566
  %v569 = vextract.low.u32 %v568
  %v570 = vextract.high.u32 %v568
  %v571 = vmul.u32.u64.compose %v567, %v562
  %v572 = vextract.low.u32 %v571
  %v573 = vextract.high.u32 %v571
  %v574 = vmul.u32 %v567, %v558
  %v575 = vadd.s32 %v570, %v572
  %vm576 = vc.u32 %v570, %v572
  %v577 = vadd.s32 %v573, 1
  %v578 = vsel %vm576, %v577, %v573
  %v579 = vadd.s32 %v574, %v578
  %v580 = vadd.s32 %v579, 536870912
  %v581 = vshrl.u32 %v580, 30
  %v582 = vshll.u32 %v581, 30
  %v583 = vsub.s32 %v579, %v582
  %vm584 = vcmp.lt.s32.totalorder %v583, 0
  %v585 = vsub.s32 0, %v583
  %v586 = vsel %vm584, %v585, %v583
  %v587 = vclz %v586
  %v588 = vsub.s32 %v587, 2
  %vm589 = vcmp.gt.s32.totalorder 0, %v588
  %v590 = vsel %vm589, 0, %v588
  %v591 = vsub.s32 32, %v590
  %v592 = vshll.u32 %v583, %v590
  %v593 = vshrl.u32 %v575, %v591
  %v594 = vor.u32 %v592, %v593
  %v595 = vsub.s32 4294967266, %v590
  %v596 = vadd.s32 %v595, 127
  %v597 = vshll.u32 %v596, 23
  %v598 = vor.u32 4788187, %v597
  %v599 = vand.u32 2147483647, %v598
  %v601 = vcvt.s32.f32 %v594
  %v602 = vmul.f32 %v601, %v599
  %v603 = vxor.u32 %v602, 2147483648
  %v604 = vsel %vm521, %v603, %v602
  %v605 = vsub.s32 4, %v581
  %v606 = vsel %vm521, %v605, %v581
  %v607 = vsel %vm520, %v257, %v604
  %v608 = vsel %vm520, 0, %v606
  %v609 = vcosq.f32.pop %v607
  %v610 = vsinq.f32.pop %v607
  %vm611 = vweird.f32 %v257
  %v612 = vadd.s32 %v608, 3
  %v613 = vand.u32 %v612, 3
  %vm614 = vcmp.lt.s32.totalorder %v613, 2
  %vm615 = vcmp.eq.s32.totalorder %v613, 0
  %v616 = vxor.u32 %v610, 2147483648
  %v617 = vsel %vm615, %v609, %v616
  %vm618 = vcmp.eq.s32.totalorder %v613, 2
  %v619 = vxor.u32 %v609, 2147483648
  %v620 = vsel %vm618, %v619, %v610
  %v621 = vsel %vm614, %v617, %v620
  %v622 = vsel %vm611, nan, %v621
  %v623 = vand.u32 2147483647, %v260
  %vm624 = vcmp.le.f32.partialorder %v623, 0.7853982
  %vm625 = vcmp.lt.s32.totalorder %v260, 0
  %v626 = vand.u32 %v260, 2139095040
  %v627 = vshrl.u32 %v626, 23
  %v628 = vsub.s32 %v627, 127
  %v629 = vand.u32 2147483647, %v260
  %v630 = vand.u32 %v629, 8388607
  %v631 = vor.u32 %v630, 8388608
  %v632 = vsub.s32 0, %v631
  %v633 = vadd.s32 %v628, 1
  %vm634 = vcmp.gt.s32.totalorder %v633, 0
  %v635 = vsel %vm634, %v633, 0
  %v636 = vshrl.u32 %v635, 5
  %v637 = vand.u32 %v635, 31
  %v638 = vsub.s32 32, %v637
  %v639 = vshrl.u32 683565275, %v638
  %v640 = vshll.u32 683565275, %v637
  %v641 = vshrl.u32 2475754826, %v638
  %v642 = vor.u32 %v640, %v641
  %v643 = vshll.u32 2475754826, %v637
  %v644 = vshrl.u32 2131351028, %v638
  %v645 = vor.u32 %v643, %v644
  %v646 = vshll.u32 2131351028, %v637
  %v647 = vshrl.u32 2102212464, %v638
  %v648 = vor.u32 %v646, %v647
  %v649 = vshll.u32 2102212464, %v637
  %v650 = vshrl.u32 920167782, %v638
  %v651 = vor.u32 %v649, %v650
  %v652 = vshll.u32 920167782, %v637
  %v653 = vshrl.u32 1326507024, %v638
  %v654 = vor.u32 %v652, %v653
  %vm655 = vcmp.lt.s32.totalorder %v636, 1
  %vm656 = vcmp.lt.s32.totalorder %v636, 2
  %vm657 = vcmp.lt.s32.totalorder %v636, 3
  %vm658 = vcmp.lt.s32.totalorder %v636, 4
  %v659 = vsel %vm655, %v639, %v642
  %v660 = vsel %vm658, %v648, 2102212464
  %v661 = vsel %vm657, %v645, %v660
  %v662 = vsel %vm656, %v659, %v661
  %v663 = vsel %vm655, %v642, %v645
  %v664 = vsel %vm658, %v651, 920167782
  %v665 = vsel %vm657, %v648, %v664
  %v666 = vsel %vm656, %v663, %v665
  %v667 = vsel %vm655, %v645, %v648
  %v668 = vsel %vm658, %v654, 1326507024
  %v669 = vsel %vm657, %v651, %v668
  %v670 = vsel %vm656, %v667, %v669
  %v671 = vshll.u32 %v631, 8
  %v672 = vmul.u32.u64.compose %v671, %v670
  %v673 = vextract.low.u32 %v672
  %v674 = vextract.high.u32 %v672
  %v675 = vmul.u32.u64.compose %v671, %v666
  %v676 = vextract.low.u32 %v675
  %v677 = vextract.high.u32 %v675
  %v678 = vmul.u32 %v671, %v662
  %v679 = vadd.s32 %v674, %v676
  %vm680 = vc.u32 %v674, %v676
  %v681 = vadd.s32 %v677, 1
  %v682 = vsel %vm680, %v681, %v677
  %v683 = vadd.s32 %v678, %v682
  %v684 = vadd.s32 %v683, 536870912
  %v685 = vshrl.u32 %v684, 30
  %v686 = vshll.u32 %v685, 30
  %v687 = vsub.s32 %v683, %v686
  %vm688 = vcmp.lt.s32.totalorder %v687, 0
  %v689 = vsub.s32 0, %v687
  %v690 = vsel %vm688, %v689, %v687
  %v691 = vclz %v690
  %v692 = vsub.s32 %v691, 2
  %vm693 = vcmp.gt.s32.totalorder 0, %v692
  %v694 = vsel %vm693, 0, %v692
  %v695 = vsub.s32 32, %v694
  %v696 = vshll.u32 %v687, %v694
  %v697 = vshrl.u32 %v679, %v695
  %v698 = vor.u32 %v696, %v697
  %v699 = vsub.s32 4294967266, %v694
  %v700 = vadd.s32 %v699, 127
  %v701 = vshll.u32 %v700, 23
  %v702 = vor.u32 4788187, %v701
  %v703 = vand.u32 2147483647, %v702
  %v705 = vcvt.s32.f32 %v698
  %v706 = vmul.f32 %v705, %v703
  %v707 = vxor.u32 %v706, 2147483648
  %v708 = vsel %vm625, %v707, %v706
  %v709 = vsub.s32 4, %v685
  %v710 = vsel %vm625, %v709, %v685
  %v711 = vsel %vm624, %v260, %v708
  %v712 = vsel %vm624, 0, %v710
  %v713 = vcosq.f32.pop %v711
  %v714 = vsinq.f32.pop %v711
  %vm715 = vweird.f32 %v260
  %v716 = vadd.s32 %v712, 3
  %v717 = vand.u32 %v716, 3
  %vm718 = vcmp.lt.s32.totalorder %v717, 2
  %vm719 = vcmp.eq.s32.totalorder %v717, 0
  %v720 = vxor.u32 %v714, 2147483648
  %v721 = vsel %vm719, %v713, %v720
  %vm722 = vcmp.eq.s32.totalorder %v717, 2
  %v723 = vxor.u32 %v713, 2147483648
  %v724 = vsel %vm722, %v723, %v714
  %v725 = vsel %vm718, %v721, %v724
  %v726 = vsel %vm715, nan, %v725
  %v727 = vand.u32 2147483647, %v265
  %vm728 = vcmp.le.f32.partialorder %v727, 0.7853982
  %vm729 = vcmp.lt.s32.totalorder %v265, 0
  %v730 = vand.u32 %v265, 2139095040
  %v731 = vshrl.u32 %v730, 23
  %v732 = vsub.s32 %v731, 127
  %v733 = vand.u32 2147483647, %v265
  %v734 = vand.u32 %v733, 8388607
  %v735 = vor.u32 %v734, 8388608
  %v736 = vsub.s32 0, %v735
  %v737 = vadd.s32 %v732, 1
  %vm738 = vcmp.gt.s32.totalorder %v737, 0
  %v739 = vsel %vm738, %v737, 0
  %v740 = vshrl.u32 %v739, 5
  %v741 = vand.u32 %v739, 31
  %v742 = vsub.s32 32, %v741
  %v743 = vshrl.u32 683565275, %v742
  %v744 = vshll.u32 683565275, %v741
  %v745 = vshrl.u32 2475754826, %v742
  %v746 = vor.u32 %v744, %v745
  %v747 = vshll.u32 2475754826, %v741
  %v748 = vshrl.u32 2131351028, %v742
  %v749 = vor.u32 %v747, %v748
  %v750 = vshll.u32 2131351028, %v741
  %v751 = vshrl.u32 2102212464, %v742
  %v752 = vor.u32 %v750, %v751
  %v753 = vshll.u32 2102212464, %v741
  %v754 = vshrl.u32 920167782, %v742
  %v755 = vor.u32 %v753, %v754
  %v756 = vshll.u32 920167782, %v741
  %v757 = vshrl.u32 1326507024, %v742
  %v758 = vor.u32 %v756, %v757
  %vm759 = vcmp.lt.s32.totalorder %v740, 1
  %vm760 = vcmp.lt.s32.totalorder %v740, 2
  %vm761 = vcmp.lt.s32.totalorder %v740, 3
  %vm762 = vcmp.lt.s32.totalorder %v740, 4
  %v763 = vsel %vm759, %v743, %v746
  %v764 = vsel %vm762, %v752, 2102212464
  %v765 = vsel %vm761, %v749, %v764
  %v766 = vsel %vm760, %v763, %v765
  %v767 = vsel %vm759, %v746, %v749
  %v768 = vsel %vm762, %v755, 920167782
  %v769 = vsel %vm761, %v752, %v768
  %v770 = vsel %vm760, %v767, %v769
  %v771 = vsel %vm759, %v749, %v752
  %v772 = vsel %vm762, %v758, 1326507024
  %v773 = vsel %vm761, %v755, %v772
  %v774 = vsel %vm760, %v771, %v773
  %v775 = vshll.u32 %v735, 8
  %v776 = vmul.u32.u64.compose %v775, %v774
  %v777 = vextract.low.u32 %v776
  %v778 = vextract.high.u32 %v776
  %v779 = vmul.u32.u64.compose %v775, %v770
  %v780 = vextract.low.u32 %v779
  %v781 = vextract.high.u32 %v779
  %v782 = vmul.u32 %v775, %v766
  %v783 = vadd.s32 %v778, %v780
  %vm784 = vc.u32 %v778, %v780
  %v785 = vadd.s32 %v781, 1
  %v786 = vsel %vm784, %v785, %v781
  %v787 = vadd.s32 %v782, %v786
  %v788 = vadd.s32 %v787, 536870912
  %v789 = vshrl.u32 %v788, 30
  %v790 = vshll.u32 %v789, 30
  %v791 = vsub.s32 %v787, %v790
  %vm792 = vcmp.lt.s32.totalorder %v791, 0
  %v793 = vsub.s32 0, %v791
  %v794 = vsel %vm792, %v793, %v791
  %v795 = vclz %v794
  %v796 = vsub.s32 %v795, 2
  %vm797 = vcmp.gt.s32.totalorder 0, %v796
  %v798 = vsel %vm797, 0, %v796
  %v799 = vsub.s32 32, %v798
  %v800 = vshll.u32 %v791, %v798
  %v801 = vshrl.u32 %v783, %v799
  %v802 = vor.u32 %v800, %v801
  %v803 = vsub.s32 4294967266, %v798
  %v804 = vadd.s32 %v803, 127
  %v805 = vshll.u32 %v804, 23
  %v806 = vor.u32 4788187, %v805
  %v807 = vand.u32 2147483647, %v806
  %v809 = vcvt.s32.f32 %v802
  %v810 = vmul.f32 %v809, %v807
  %v811 = vxor.u32 %v810, 2147483648
  %v812 = vsel %vm729, %v811, %v810
  %v813 = vsub.s32 4, %v789
  %v814 = vsel %vm729, %v813, %v789
  %v815 = vsel %vm728, %v265, %v812
  %v816 = vsel %vm728, 0, %v814
  %v817 = vcosq.f32.pop %v815
  %v818 = vsinq.f32.pop %v815
  %vm819 = vweird.f32 %v265
  %v820 = vadd.s32 %v816, 3
  %v821 = vand.u32 %v820, 3
  %vm822 = vcmp.lt.s32.totalorder %v821, 2
  %vm823 = vcmp.eq.s32.totalorder %v821, 0
  %v824 = vxor.u32 %v818, 2147483648
  %v825 = vsel %vm823, %v817, %v824
  %vm826 = vcmp.eq.s32.totalorder %v821, 2
  %v827 = vxor.u32 %v817, 2147483648
  %v828 = vsel %vm826, %v827, %v818
  %v829 = vsel %vm822, %v825, %v828
  %v830 = vsel %vm819, nan, %v829
  %v831 = vand.u32 2147483647, %v268
  %vm832 = vcmp.le.f32.partialorder %v831, 0.7853982
  %vm833 = vcmp.lt.s32.totalorder %v268, 0
  %v834 = vand.u32 %v268, 2139095040
  %v835 = vshrl.u32 %v834, 23
  %v836 = vsub.s32 %v835, 127
  %v837 = vand.u32 2147483647, %v268
  %v838 = vand.u32 %v837, 8388607
  %v839 = vor.u32 %v838, 8388608
  %v840 = vsub.s32 0, %v839
  %v841 = vadd.s32 %v836, 1
  %vm842 = vcmp.gt.s32.totalorder %v841, 0
  %v843 = vsel %vm842, %v841, 0
  %v844 = vshrl.u32 %v843, 5
  %v845 = vand.u32 %v843, 31
  %v846 = vsub.s32 32, %v845
  %v847 = vshrl.u32 683565275, %v846
  %v848 = vshll.u32 683565275, %v845
  %v849 = vshrl.u32 2475754826, %v846
  %v850 = vor.u32 %v848, %v849
  %v851 = vshll.u32 2475754826, %v845
  %v852 = vshrl.u32 2131351028, %v846
  %v853 = vor.u32 %v851, %v852
  %v854 = vshll.u32 2131351028, %v845
  %v855 = vshrl.u32 2102212464, %v846
  %v856 = vor.u32 %v854, %v855
  %v857 = vshll.u32 2102212464, %v845
  %v858 = vshrl.u32 920167782, %v846
  %v859 = vor.u32 %v857, %v858
  %v860 = vshll.u32 920167782, %v845
  %v861 = vshrl.u32 1326507024, %v846
  %v862 = vor.u32 %v860, %v861
  %vm863 = vcmp.lt.s32.totalorder %v844, 1
  %vm864 = vcmp.lt.s32.totalorder %v844, 2
  %vm865 = vcmp.lt.s32.totalorder %v844, 3
  %vm866 = vcmp.lt.s32.totalorder %v844, 4
  %v867 = vsel %vm863, %v847, %v850
  %v868 = vsel %vm866, %v856, 2102212464
  %v869 = vsel %vm865, %v853, %v868
  %v870 = vsel %vm864, %v867, %v869
  %v871 = vsel %vm863, %v850, %v853
  %v872 = vsel %vm866, %v859, 920167782
  %v873 = vsel %vm865, %v856, %v872
  %v874 = vsel %vm864, %v871, %v873
  %v875 = vsel %vm863, %v853, %v856
  %v876 = vsel %vm866, %v862, 1326507024
  %v877 = vsel %vm865, %v859, %v876
  %v878 = vsel %vm864, %v875, %v877
  %v879 = vshll.u32 %v839, 8
  %v880 = vmul.u32.u64.compose %v879, %v878
  %v881 = vextract.low.u32 %v880
  %v882 = vextract.high.u32 %v880
  %v883 = vmul.u32.u64.compose %v879, %v874
  %v884 = vextract.low.u32 %v883
  %v885 = vextract.high.u32 %v883
  %v886 = vmul.u32 %v879, %v870
  %v887 = vadd.s32 %v882, %v884
  %vm888 = vc.u32 %v882, %v884
  %v889 = vadd.s32 %v885, 1
  %v890 = vsel %vm888, %v889, %v885
  %v891 = vadd.s32 %v886, %v890
  %v892 = vadd.s32 %v891, 536870912
  %v893 = vshrl.u32 %v892, 30
  %v894 = vshll.u32 %v893, 30
  %v895 = vsub.s32 %v891, %v894
  %vm896 = vcmp.lt.s32.totalorder %v895, 0
  %v897 = vsub.s32 0, %v895
  %v898 = vsel %vm896, %v897, %v895
  %v899 = vclz %v898
  %v900 = vsub.s32 %v899, 2
  %vm901 = vcmp.gt.s32.totalorder 0, %v900
  %v902 = vsel %vm901, 0, %v900
  %v903 = vsub.s32 32, %v902
  %v904 = vshll.u32 %v895, %v902
  %v905 = vshrl.u32 %v887, %v903
  %v906 = vor.u32 %v904, %v905
  %v907 = vsub.s32 4294967266, %v902
  %v908 = vadd.s32 %v907, 127
  %v909 = vshll.u32 %v908, 23
  %v910 = vor.u32 4788187, %v909
  %v911 = vand.u32 2147483647, %v910
  %v913 = vcvt.s32.f32 %v906
  %v914 = vmul.f32 %v913, %v911
  %v915 = vxor.u32 %v914, 2147483648
  %v916 = vsel %vm833, %v915, %v914
  %v917 = vsub.s32 4, %v893
  %v918 = vsel %vm833, %v917, %v893
  %v919 = vsel %vm832, %v268, %v916
  %v920 = vsel %vm832, 0, %v918
  %v921 = vcosq.f32.pop %v919
  %v922 = vsinq.f32.pop %v919
  %vm923 = vweird.f32 %v268
  %v924 = vadd.s32 %v920, 3
  %v925 = vand.u32 %v924, 3
  %vm926 = vcmp.lt.s32.totalorder %v925, 2
  %vm927 = vcmp.eq.s32.totalorder %v925, 0
  %v928 = vxor.u32 %v922, 2147483648
  %v929 = vsel %vm927, %v921, %v928
  %vm930 = vcmp.eq.s32.totalorder %v925, 2
  %v931 = vxor.u32 %v921, 2147483648
  %v932 = vsel %vm930, %v931, %v922
  %v933 = vsel %vm926, %v929, %v932
  %v934 = vsel %vm923, nan, %v933
  %v935 = vand.u32 2147483647, %v273
  %vm936 = vcmp.le.f32.partialorder %v935, 0.7853982
  %vm937 = vcmp.lt.s32.totalorder %v273, 0
  %v938 = vand.u32 %v273, 2139095040
  %v939 = vshrl.u32 %v938, 23
  %v940 = vsub.s32 %v939, 127
  %v941 = vand.u32 2147483647, %v273
  %v942 = vand.u32 %v941, 8388607
  %v943 = vor.u32 %v942, 8388608
  %v944 = vsub.s32 0, %v943
  %v945 = vadd.s32 %v940, 1
  %vm946 = vcmp.gt.s32.totalorder %v945, 0
  %v947 = vsel %vm946, %v945, 0
  %v948 = vshrl.u32 %v947, 5
  %v949 = vand.u32 %v947, 31
  %v950 = vsub.s32 32, %v949
  %v951 = vshrl.u32 683565275, %v950
  %v952 = vshll.u32 683565275, %v949
  %v953 = vshrl.u32 2475754826, %v950
  %v954 = vor.u32 %v952, %v953
  %v955 = vshll.u32 2475754826, %v949
  %v956 = vshrl.u32 2131351028, %v950
  %v957 = vor.u32 %v955, %v956
  %v958 = vshll.u32 2131351028, %v949
  %v959 = vshrl.u32 2102212464, %v950
  %v960 = vor.u32 %v958, %v959
  %v961 = vshll.u32 2102212464, %v949
  %v962 = vshrl.u32 920167782, %v950
  %v963 = vor.u32 %v961, %v962
  %v964 = vshll.u32 920167782, %v949
  %v965 = vshrl.u32 1326507024, %v950
  %v966 = vor.u32 %v964, %v965
  %vm967 = vcmp.lt.s32.totalorder %v948, 1
  %vm968 = vcmp.lt.s32.totalorder %v948, 2
  %vm969 = vcmp.lt.s32.totalorder %v948, 3
  %vm970 = vcmp.lt.s32.totalorder %v948, 4
  %v971 = vsel %vm967, %v951, %v954
  %v972 = vsel %vm970, %v960, 2102212464
  %v973 = vsel %vm969, %v957, %v972
  %v974 = vsel %vm968, %v971, %v973
  %v975 = vsel %vm967, %v954, %v957
  %v976 = vsel %vm970, %v963, 920167782
  %v977 = vsel %vm969, %v960, %v976
  %v978 = vsel %vm968, %v975, %v977
  %v979 = vsel %vm967, %v957, %v960
  %v980 = vsel %vm970, %v966, 1326507024
  %v981 = vsel %vm969, %v963, %v980
  %v982 = vsel %vm968, %v979, %v981
  %v983 = vshll.u32 %v943, 8
  %v984 = vmul.u32.u64.compose %v983, %v982
  %v985 = vextract.low.u32 %v984
  %v986 = vextract.high.u32 %v984
  %v987 = vmul.u32.u64.compose %v983, %v978
  %v988 = vextract.low.u32 %v987
  %v989 = vextract.high.u32 %v987
  %v990 = vmul.u32 %v983, %v974
  %v991 = vadd.s32 %v986, %v988
  %vm992 = vc.u32 %v986, %v988
  %v993 = vadd.s32 %v989, 1
  %v994 = vsel %vm992, %v993, %v989
  %v995 = vadd.s32 %v990, %v994
  %v996 = vadd.s32 %v995, 536870912
  %v997 = vshrl.u32 %v996, 30
  %v998 = vshll.u32 %v997, 30
  %v999 = vsub.s32 %v995, %v998
  %vm1000 = vcmp.lt.s32.totalorder %v999, 0
  %v1001 = vsub.s32 0, %v999
  %v1002 = vsel %vm1000, %v1001, %v999
  %v1003 = vclz %v1002
  %v1004 = vsub.s32 %v1003, 2
  %vm1005 = vcmp.gt.s32.totalorder 0, %v1004
  %v1006 = vsel %vm1005, 0, %v1004
  %v1007 = vsub.s32 32, %v1006
  %v1008 = vshll.u32 %v999, %v1006
  %v1009 = vshrl.u32 %v991, %v1007
  %v1010 = vor.u32 %v1008, %v1009
  %v1011 = vsub.s32 4294967266, %v1006
  %v1012 = vadd.s32 %v1011, 127
  %v1013 = vshll.u32 %v1012, 23
  %v1014 = vor.u32 4788187, %v1013
  %v1015 = vand.u32 2147483647, %v1014
  %v1017 = vcvt.s32.f32 %v1010
  %v1018 = vmul.f32 %v1017, %v1015
  %v1019 = vxor.u32 %v1018, 2147483648
  %v1020 = vsel %vm937, %v1019, %v1018
  %v1021 = vsub.s32 4, %v997
  %v1022 = vsel %vm937, %v1021, %v997
  %v1023 = vsel %vm936, %v273, %v1020
  %v1024 = vsel %vm936, 0, %v1022
  %v1025 = vcosq.f32.pop %v1023
  %v1026 = vsinq.f32.pop %v1023
  %vm1027 = vweird.f32 %v273
  %v1028 = vadd.s32 %v1024, 3
  %v1029 = vand.u32 %v1028, 3
  %vm1030 = vcmp.lt.s32.totalorder %v1029, 2
  %vm1031 = vcmp.eq.s32.totalorder %v1029, 0
  %v1032 = vxor.u32 %v1026, 2147483648
  %v1033 = vsel %vm1031, %v1025, %v1032
  %vm1034 = vcmp.eq.s32.totalorder %v1029, 2
  %v1035 = vxor.u32 %v1025, 2147483648
  %v1036 = vsel %vm1034, %v1035, %v1026
  %v1037 = vsel %vm1030, %v1033, %v1036
  %v1038 = vsel %vm1027, nan, %v1037
  %v1039 = vand.u32 2147483647, %v276
  %vm1040 = vcmp.le.f32.partialorder %v1039, 0.7853982
  %vm1041 = vcmp.lt.s32.totalorder %v276, 0
  %v1042 = vand.u32 %v276, 2139095040
  %v1043 = vshrl.u32 %v1042, 23
  %v1044 = vsub.s32 %v1043, 127
  %v1045 = vand.u32 2147483647, %v276
  %v1046 = vand.u32 %v1045, 8388607
  %v1047 = vor.u32 %v1046, 8388608
  %v1048 = vsub.s32 0, %v1047
  %v1049 = vadd.s32 %v1044, 1
  %vm1050 = vcmp.gt.s32.totalorder %v1049, 0
  %v1051 = vsel %vm1050, %v1049, 0
  %v1052 = vshrl.u32 %v1051, 5
  %v1053 = vand.u32 %v1051, 31
  %v1054 = vsub.s32 32, %v1053
  %v1055 = vshrl.u32 683565275, %v1054
  %v1056 = vshll.u32 683565275, %v1053
  %v1057 = vshrl.u32 2475754826, %v1054
  %v1058 = vor.u32 %v1056, %v1057
  %v1059 = vshll.u32 2475754826, %v1053
  %v1060 = vshrl.u32 2131351028, %v1054
  %v1061 = vor.u32 %v1059, %v1060
  %v1062 = vshll.u32 2131351028, %v1053
  %v1063 = vshrl.u32 2102212464, %v1054
  %v1064 = vor.u32 %v1062, %v1063
  %v1065 = vshll.u32 2102212464, %v1053
  %v1066 = vshrl.u32 920167782, %v1054
  %v1067 = vor.u32 %v1065, %v1066
  %v1068 = vshll.u32 920167782, %v1053
  %v1069 = vshrl.u32 1326507024, %v1054
  %v1070 = vor.u32 %v1068, %v1069
  %vm1071 = vcmp.lt.s32.totalorder %v1052, 1
  %vm1072 = vcmp.lt.s32.totalorder %v1052, 2
  %vm1073 = vcmp.lt.s32.totalorder %v1052, 3
  %vm1074 = vcmp.lt.s32.totalorder %v1052, 4
  %v1075 = vsel %vm1071, %v1055, %v1058
  %v1076 = vsel %vm1074, %v1064, 2102212464
  %v1077 = vsel %vm1073, %v1061, %v1076
  %v1078 = vsel %vm1072, %v1075, %v1077
  %v1079 = vsel %vm1071, %v1058, %v1061
  %v1080 = vsel %vm1074, %v1067, 920167782
  %v1081 = vsel %vm1073, %v1064, %v1080
  %v1082 = vsel %vm1072, %v1079, %v1081
  %v1083 = vsel %vm1071, %v1061, %v1064
  %v1084 = vsel %vm1074, %v1070, 1326507024
  %v1085 = vsel %vm1073, %v1067, %v1084
  %v1086 = vsel %vm1072, %v1083, %v1085
  %v1087 = vshll.u32 %v1047, 8
  %v1088 = vmul.u32.u64.compose %v1087, %v1086
  %v1089 = vextract.low.u32 %v1088
  %v1090 = vextract.high.u32 %v1088
  %v1091 = vmul.u32.u64.compose %v1087, %v1082
  %v1092 = vextract.low.u32 %v1091
  %v1093 = vextract.high.u32 %v1091
  %v1094 = vmul.u32 %v1087, %v1078
  %v1095 = vadd.s32 %v1090, %v1092
  %vm1096 = vc.u32 %v1090, %v1092
  %v1097 = vadd.s32 %v1093, 1
  %v1098 = vsel %vm1096, %v1097, %v1093
  %v1099 = vadd.s32 %v1094, %v1098
  %v1100 = vadd.s32 %v1099, 536870912
  %v1101 = vshrl.u32 %v1100, 30
  %v1102 = vshll.u32 %v1101, 30
  %v1103 = vsub.s32 %v1099, %v1102
  %vm1104 = vcmp.lt.s32.totalorder %v1103, 0
  %v1105 = vsub.s32 0, %v1103
  %v1106 = vsel %vm1104, %v1105, %v1103
  %v1107 = vclz %v1106
  %v1108 = vsub.s32 %v1107, 2
  %vm1109 = vcmp.gt.s32.totalorder 0, %v1108
  %v1110 = vsel %vm1109, 0, %v1108
  %v1111 = vsub.s32 32, %v1110
  %v1112 = vshll.u32 %v1103, %v1110
  %v1113 = vshrl.u32 %v1095, %v1111
  %v1114 = vor.u32 %v1112, %v1113
  %v1115 = vsub.s32 4294967266, %v1110
  %v1116 = vadd.s32 %v1115, 127
  %v1117 = vshll.u32 %v1116, 23
  %v1118 = vor.u32 4788187, %v1117
  %v1119 = vand.u32 2147483647, %v1118
  %v1121 = vcvt.s32.f32 %v1114
  %v1122 = vmul.f32 %v1121, %v1119
  %v1123 = vxor.u32 %v1122, 2147483648
  %v1124 = vsel %vm1041, %v1123, %v1122
  %v1125 = vsub.s32 4, %v1101
  %v1126 = vsel %vm1041, %v1125, %v1101
  %v1127 = vsel %vm1040, %v276, %v1124
  %v1128 = vsel %vm1040, 0, %v1126
  %v1129 = vcosq.f32.pop %v1127
  %v1130 = vsinq.f32.pop %v1127
  %vm1131 = vweird.f32 %v276
  %v1132 = vadd.s32 %v1128, 3
  %v1133 = vand.u32 %v1132, 3
  %vm1134 = vcmp.lt.s32.totalorder %v1133, 2
  %vm1135 = vcmp.eq.s32.totalorder %v1133, 0
  %v1136 = vxor.u32 %v1130, 2147483648
  %v1137 = vsel %vm1135, %v1129, %v1136
  %vm1138 = vcmp.eq.s32.totalorder %v1133, 2
  %v1139 = vxor.u32 %v1129, 2147483648
  %v1140 = vsel %vm1138, %v1139, %v1130
  %v1141 = vsel %vm1134, %v1137, %v1140
  %v1142 = vsel %vm1131, nan, %v1141
  %v1143 = vand.u32 2147483647, %v281
  %vm1144 = vcmp.le.f32.partialorder %v1143, 0.7853982
  %vm1145 = vcmp.lt.s32.totalorder %v281, 0
  %v1146 = vand.u32 %v281, 2139095040
  %v1147 = vshrl.u32 %v1146, 23
  %v1148 = vsub.s32 %v1147, 127
  %v1149 = vand.u32 2147483647, %v281
  %v1150 = vand.u32 %v1149, 8388607
  %v1151 = vor.u32 %v1150, 8388608
  %v1152 = vsub.s32 0, %v1151
  %v1153 = vadd.s32 %v1148, 1
  %vm1154 = vcmp.gt.s32.totalorder %v1153, 0
  %v1155 = vsel %vm1154, %v1153, 0
  %v1156 = vshrl.u32 %v1155, 5
  %v1157 = vand.u32 %v1155, 31
  %v1158 = vsub.s32 32, %v1157
  %v1159 = vshrl.u32 683565275, %v1158
  %v1160 = vshll.u32 683565275, %v1157
  %v1161 = vshrl.u32 2475754826, %v1158
  %v1162 = vor.u32 %v1160, %v1161
  %v1163 = vshll.u32 2475754826, %v1157
  %v1164 = vshrl.u32 2131351028, %v1158
  %v1165 = vor.u32 %v1163, %v1164
  %v1166 = vshll.u32 2131351028, %v1157
  %v1167 = vshrl.u32 2102212464, %v1158
  %v1168 = vor.u32 %v1166, %v1167
  %v1169 = vshll.u32 2102212464, %v1157
  %v1170 = vshrl.u32 920167782, %v1158
  %v1171 = vor.u32 %v1169, %v1170
  %v1172 = vshll.u32 920167782, %v1157
  %v1173 = vshrl.u32 1326507024, %v1158
  %v1174 = vor.u32 %v1172, %v1173
  %vm1175 = vcmp.lt.s32.totalorder %v1156, 1
  %vm1176 = vcmp.lt.s32.totalorder %v1156, 2
  %vm1177 = vcmp.lt.s32.totalorder %v1156, 3
  %vm1178 = vcmp.lt.s32.totalorder %v1156, 4
  %v1179 = vsel %vm1175, %v1159, %v1162
  %v1180 = vsel %vm1178, %v1168, 2102212464
  %v1181 = vsel %vm1177, %v1165, %v1180
  %v1182 = vsel %vm1176, %v1179, %v1181
  %v1183 = vsel %vm1175, %v1162, %v1165
  %v1184 = vsel %vm1178, %v1171, 920167782
  %v1185 = vsel %vm1177, %v1168, %v1184
  %v1186 = vsel %vm1176, %v1183, %v1185
  %v1187 = vsel %vm1175, %v1165, %v1168
  %v1188 = vsel %vm1178, %v1174, 1326507024
  %v1189 = vsel %vm1177, %v1171, %v1188
  %v1190 = vsel %vm1176, %v1187, %v1189
  %v1191 = vshll.u32 %v1151, 8
  %v1192 = vmul.u32.u64.compose %v1191, %v1190
  %v1193 = vextract.low.u32 %v1192
  %v1194 = vextract.high.u32 %v1192
  %v1195 = vmul.u32.u64.compose %v1191, %v1186
  %v1196 = vextract.low.u32 %v1195
  %v1197 = vextract.high.u32 %v1195
  %v1198 = vmul.u32 %v1191, %v1182
  %v1199 = vadd.s32 %v1194, %v1196
  %vm1200 = vc.u32 %v1194, %v1196
  %v1201 = vadd.s32 %v1197, 1
  %v1202 = vsel %vm1200, %v1201, %v1197
  %v1203 = vadd.s32 %v1198, %v1202
  %v1204 = vadd.s32 %v1203, 536870912
  %v1205 = vshrl.u32 %v1204, 30
  %v1206 = vshll.u32 %v1205, 30
  %v1207 = vsub.s32 %v1203, %v1206
  %vm1208 = vcmp.lt.s32.totalorder %v1207, 0
  %v1209 = vsub.s32 0, %v1207
  %v1210 = vsel %vm1208, %v1209, %v1207
  %v1211 = vclz %v1210
  %v1212 = vsub.s32 %v1211, 2
  %vm1213 = vcmp.gt.s32.totalorder 0, %v1212
  %v1214 = vsel %vm1213, 0, %v1212
  %v1215 = vsub.s32 32, %v1214
  %v1216 = vshll.u32 %v1207, %v1214
  %v1217 = vshrl.u32 %v1199, %v1215
  %v1218 = vor.u32 %v1216, %v1217
  %v1219 = vsub.s32 4294967266, %v1214
  %v1220 = vadd.s32 %v1219, 127
  %v1221 = vshll.u32 %v1220, 23
  %v1222 = vor.u32 4788187, %v1221
  %v1223 = vand.u32 2147483647, %v1222
  %v1225 = vcvt.s32.f32 %v1218
  %v1226 = vmul.f32 %v1225, %v1223
  %v1227 = vxor.u32 %v1226, 2147483648
  %v1228 = vsel %vm1145, %v1227, %v1226
  %v1229 = vsub.s32 4, %v1205
  %v1230 = vsel %vm1145, %v1229, %v1205
  %v1231 = vsel %vm1144, %v281, %v1228
  %v1232 = vsel %vm1144, 0, %v1230
  %v1233 = vcosq.f32.pop %v1231
  %v1234 = vsinq.f32.pop %v1231
  %vm1235 = vweird.f32 %v281
  %v1236 = vadd.s32 %v1232, 3
  %v1237 = vand.u32 %v1236, 3
  %vm1238 = vcmp.lt.s32.totalorder %v1237, 2
  %vm1239 = vcmp.eq.s32.totalorder %v1237, 0
  %v1240 = vxor.u32 %v1234, 2147483648
  %v1241 = vsel %vm1239, %v1233, %v1240
  %vm1242 = vcmp.eq.s32.totalorder %v1237, 2
  %v1243 = vxor.u32 %v1233, 2147483648
  %v1244 = vsel %vm1242, %v1243, %v1234
  %v1245 = vsel %vm1238, %v1241, %v1244
  %v1246 = vsel %vm1235, nan, %v1245
  %v1247 = vand.u32 2147483647, %v284
  %vm1248 = vcmp.le.f32.partialorder %v1247, 0.7853982
  %vm1249 = vcmp.lt.s32.totalorder %v284, 0
  %v1250 = vand.u32 %v284, 2139095040
  %v1251 = vshrl.u32 %v1250, 23
  %v1252 = vsub.s32 %v1251, 127
  %v1253 = vand.u32 2147483647, %v284
  %v1254 = vand.u32 %v1253, 8388607
  %v1255 = vor.u32 %v1254, 8388608
  %v1256 = vsub.s32 0, %v1255
  %v1257 = vadd.s32 %v1252, 1
  %vm1258 = vcmp.gt.s32.totalorder %v1257, 0
  %v1259 = vsel %vm1258, %v1257, 0
  %v1260 = vshrl.u32 %v1259, 5
  %v1261 = vand.u32 %v1259, 31
  %v1262 = vsub.s32 32, %v1261
  %v1263 = vshrl.u32 683565275, %v1262
  %v1264 = vshll.u32 683565275, %v1261
  %v1265 = vshrl.u32 2475754826, %v1262
  %v1266 = vor.u32 %v1264, %v1265
  %v1267 = vshll.u32 2475754826, %v1261
  %v1268 = vshrl.u32 2131351028, %v1262
  %v1269 = vor.u32 %v1267, %v1268
  %v1270 = vshll.u32 2131351028, %v1261
  %v1271 = vshrl.u32 2102212464, %v1262
  %v1272 = vor.u32 %v1270, %v1271
  %v1273 = vshll.u32 2102212464, %v1261
  %v1274 = vshrl.u32 920167782, %v1262
  %v1275 = vor.u32 %v1273, %v1274
  %v1276 = vshll.u32 920167782, %v1261
  %v1277 = vshrl.u32 1326507024, %v1262
  %v1278 = vor.u32 %v1276, %v1277
  %vm1279 = vcmp.lt.s32.totalorder %v1260, 1
  %vm1280 = vcmp.lt.s32.totalorder %v1260, 2
  %vm1281 = vcmp.lt.s32.totalorder %v1260, 3
  %vm1282 = vcmp.lt.s32.totalorder %v1260, 4
  %v1283 = vsel %vm1279, %v1263, %v1266
  %v1284 = vsel %vm1282, %v1272, 2102212464
  %v1285 = vsel %vm1281, %v1269, %v1284
  %v1286 = vsel %vm1280, %v1283, %v1285
  %v1287 = vsel %vm1279, %v1266, %v1269
  %v1288 = vsel %vm1282, %v1275, 920167782
  %v1289 = vsel %vm1281, %v1272, %v1288
  %v1290 = vsel %vm1280, %v1287, %v1289
  %v1291 = vsel %vm1279, %v1269, %v1272
  %v1292 = vsel %vm1282, %v1278, 1326507024
  %v1293 = vsel %vm1281, %v1275, %v1292
  %v1294 = vsel %vm1280, %v1291, %v1293
  %v1295 = vshll.u32 %v1255, 8
  %v1296 = vmul.u32.u64.compose %v1295, %v1294
  %v1297 = vextract.low.u32 %v1296
  %v1298 = vextract.high.u32 %v1296
  %v1299 = vmul.u32.u64.compose %v1295, %v1290
  %v1300 = vextract.low.u32 %v1299
  %v1301 = vextract.high.u32 %v1299
  %v1302 = vmul.u32 %v1295, %v1286
  %v1303 = vadd.s32 %v1298, %v1300
  %vm1304 = vc.u32 %v1298, %v1300
  %v1305 = vadd.s32 %v1301, 1
  %v1306 = vsel %vm1304, %v1305, %v1301
  %v1307 = vadd.s32 %v1302, %v1306
  %v1308 = vadd.s32 %v1307, 536870912
  %v1309 = vshrl.u32 %v1308, 30
  %v1310 = vshll.u32 %v1309, 30
  %v1311 = vsub.s32 %v1307, %v1310
  %vm1312 = vcmp.lt.s32.totalorder %v1311, 0
  %v1313 = vsub.s32 0, %v1311
  %v1314 = vsel %vm1312, %v1313, %v1311
  %v1315 = vclz %v1314
  %v1316 = vsub.s32 %v1315, 2
  %vm1317 = vcmp.gt.s32.totalorder 0, %v1316
  %v1318 = vsel %vm1317, 0, %v1316
  %v1319 = vsub.s32 32, %v1318
  %v1320 = vshll.u32 %v1311, %v1318
  %v1321 = vshrl.u32 %v1303, %v1319
  %v1322 = vor.u32 %v1320, %v1321
  %v1323 = vsub.s32 4294967266, %v1318
  %v1324 = vadd.s32 %v1323, 127
  %v1325 = vshll.u32 %v1324, 23
  %v1326 = vor.u32 4788187, %v1325
  %v1327 = vand.u32 2147483647, %v1326
  %v1329 = vcvt.s32.f32 %v1322
  %v1330 = vmul.f32 %v1329, %v1327
  %v1331 = vxor.u32 %v1330, 2147483648
  %v1332 = vsel %vm1249, %v1331, %v1330
  %v1333 = vsub.s32 4, %v1309
  %v1334 = vsel %vm1249, %v1333, %v1309
  %v1335 = vsel %vm1248, %v284, %v1332
  %v1336 = vsel %vm1248, 0, %v1334
  %v1337 = vcosq.f32.pop %v1335
  %v1338 = vsinq.f32.pop %v1335
  %vm1339 = vweird.f32 %v284
  %v1340 = vadd.s32 %v1336, 3
  %v1341 = vand.u32 %v1340, 3
  %vm1342 = vcmp.lt.s32.totalorder %v1341, 2
  %vm1343 = vcmp.eq.s32.totalorder %v1341, 0
  %v1344 = vxor.u32 %v1338, 2147483648
  %v1345 = vsel %vm1343, %v1337, %v1344
  %vm1346 = vcmp.eq.s32.totalorder %v1341, 2
  %v1347 = vxor.u32 %v1337, 2147483648
  %v1348 = vsel %vm1346, %v1347, %v1338
  %v1349 = vsel %vm1342, %v1345, %v1348
  %v1350 = vsel %vm1339, nan, %v1349
  %v1351 = vand.u32 2147483647, %v289
  %vm1352 = vcmp.le.f32.partialorder %v1351, 0.7853982
  %vm1353 = vcmp.lt.s32.totalorder %v289, 0
  %v1354 = vand.u32 %v289, 2139095040
  %v1355 = vshrl.u32 %v1354, 23
  %v1356 = vsub.s32 %v1355, 127
  %v1357 = vand.u32 2147483647, %v289
  %v1358 = vand.u32 %v1357, 8388607
  %v1359 = vor.u32 %v1358, 8388608
  %v1360 = vsub.s32 0, %v1359
  %v1361 = vadd.s32 %v1356, 1
  %vm1362 = vcmp.gt.s32.totalorder %v1361, 0
  %v1363 = vsel %vm1362, %v1361, 0
  %v1364 = vshrl.u32 %v1363, 5
  %v1365 = vand.u32 %v1363, 31
  %v1366 = vsub.s32 32, %v1365
  %v1367 = vshrl.u32 683565275, %v1366
  %v1368 = vshll.u32 683565275, %v1365
  %v1369 = vshrl.u32 2475754826, %v1366
  %v1370 = vor.u32 %v1368, %v1369
  %v1371 = vshll.u32 2475754826, %v1365
  %v1372 = vshrl.u32 2131351028, %v1366
  %v1373 = vor.u32 %v1371, %v1372
  %v1374 = vshll.u32 2131351028, %v1365
  %v1375 = vshrl.u32 2102212464, %v1366
  %v1376 = vor.u32 %v1374, %v1375
  %v1377 = vshll.u32 2102212464, %v1365
  %v1378 = vshrl.u32 920167782, %v1366
  %v1379 = vor.u32 %v1377, %v1378
  %v1380 = vshll.u32 920167782, %v1365
  %v1381 = vshrl.u32 1326507024, %v1366
  %v1382 = vor.u32 %v1380, %v1381
  %vm1383 = vcmp.lt.s32.totalorder %v1364, 1
  %vm1384 = vcmp.lt.s32.totalorder %v1364, 2
  %vm1385 = vcmp.lt.s32.totalorder %v1364, 3
  %vm1386 = vcmp.lt.s32.totalorder %v1364, 4
  %v1387 = vsel %vm1383, %v1367, %v1370
  %v1388 = vsel %vm1386, %v1376, 2102212464
  %v1389 = vsel %vm1385, %v1373, %v1388
  %v1390 = vsel %vm1384, %v1387, %v1389
  %v1391 = vsel %vm1383, %v1370, %v1373
  %v1392 = vsel %vm1386, %v1379, 920167782
  %v1393 = vsel %vm1385, %v1376, %v1392
  %v1394 = vsel %vm1384, %v1391, %v1393
  %v1395 = vsel %vm1383, %v1373, %v1376
  %v1396 = vsel %vm1386, %v1382, 1326507024
  %v1397 = vsel %vm1385, %v1379, %v1396
  %v1398 = vsel %vm1384, %v1395, %v1397
  %v1399 = vshll.u32 %v1359, 8
  %v1400 = vmul.u32.u64.compose %v1399, %v1398
  %v1401 = vextract.low.u32 %v1400
  %v1402 = vextract.high.u32 %v1400
  %v1403 = vmul.u32.u64.compose %v1399, %v1394
  %v1404 = vextract.low.u32 %v1403
  %v1405 = vextract.high.u32 %v1403
  %v1406 = vmul.u32 %v1399, %v1390
  %v1407 = vadd.s32 %v1402, %v1404
  %vm1408 = vc.u32 %v1402, %v1404
  %v1409 = vadd.s32 %v1405, 1
  %v1410 = vsel %vm1408, %v1409, %v1405
  %v1411 = vadd.s32 %v1406, %v1410
  %v1412 = vadd.s32 %v1411, 536870912
  %v1413 = vshrl.u32 %v1412, 30
  %v1414 = vshll.u32 %v1413, 30
  %v1415 = vsub.s32 %v1411, %v1414
  %vm1416 = vcmp.lt.s32.totalorder %v1415, 0
  %v1417 = vsub.s32 0, %v1415
  %v1418 = vsel %vm1416, %v1417, %v1415
  %v1419 = vclz %v1418
  %v1420 = vsub.s32 %v1419, 2
  %vm1421 = vcmp.gt.s32.totalorder 0, %v1420
  %v1422 = vsel %vm1421, 0, %v1420
  %v1423 = vsub.s32 32, %v1422
  %v1424 = vshll.u32 %v1415, %v1422
  %v1425 = vshrl.u32 %v1407, %v1423
  %v1426 = vor.u32 %v1424, %v1425
  %v1427 = vsub.s32 4294967266, %v1422
  %v1428 = vadd.s32 %v1427, 127
  %v1429 = vshll.u32 %v1428, 23
  %v1430 = vor.u32 4788187, %v1429
  %v1431 = vand.u32 2147483647, %v1430
  %v1433 = vcvt.s32.f32 %v1426
  %v1434 = vmul.f32 %v1433, %v1431
  %v1435 = vxor.u32 %v1434, 2147483648
  %v1436 = vsel %vm1353, %v1435, %v1434
  %v1437 = vsub.s32 4, %v1413
  %v1438 = vsel %vm1353, %v1437, %v1413
  %v1439 = vsel %vm1352, %v289, %v1436
  %v1440 = vsel %vm1352, 0, %v1438
  %v1441 = vcosq.f32.pop %v1439
  %v1442 = vsinq.f32.pop %v1439
  %vm1443 = vweird.f32 %v289
  %v1444 = vadd.s32 %v1440, 3
  %v1445 = vand.u32 %v1444, 3
  %vm1446 = vcmp.lt.s32.totalorder %v1445, 2
  %vm1447 = vcmp.eq.s32.totalorder %v1445, 0
  %v1448 = vxor.u32 %v1442, 2147483648
  %v1449 = vsel %vm1447, %v1441, %v1448
  %vm1450 = vcmp.eq.s32.totalorder %v1445, 2
  %v1451 = vxor.u32 %v1441, 2147483648
  %v1452 = vsel %vm1450, %v1451, %v1442
  %v1453 = vsel %vm1446, %v1449, %v1452
  %v1454 = vsel %vm1443, nan, %v1453
  %v1455 = vand.u32 2147483647, %v292
  %vm1456 = vcmp.le.f32.partialorder %v1455, 0.7853982
  %vm1457 = vcmp.lt.s32.totalorder %v292, 0
  %v1458 = vand.u32 %v292, 2139095040
  %v1459 = vshrl.u32 %v1458, 23
  %v1460 = vsub.s32 %v1459, 127
  %v1461 = vand.u32 2147483647, %v292
  %v1462 = vand.u32 %v1461, 8388607
  %v1463 = vor.u32 %v1462, 8388608
  %v1464 = vsub.s32 0, %v1463
  %v1465 = vadd.s32 %v1460, 1
  %vm1466 = vcmp.gt.s32.totalorder %v1465, 0
  %v1467 = vsel %vm1466, %v1465, 0
  %v1468 = vshrl.u32 %v1467, 5
  %v1469 = vand.u32 %v1467, 31
  %v1470 = vsub.s32 32, %v1469
  %v1471 = vshrl.u32 683565275, %v1470
  %v1472 = vshll.u32 683565275, %v1469
  %v1473 = vshrl.u32 2475754826, %v1470
  %v1474 = vor.u32 %v1472, %v1473
  %v1475 = vshll.u32 2475754826, %v1469
  %v1476 = vshrl.u32 2131351028, %v1470
  %v1477 = vor.u32 %v1475, %v1476
  %v1478 = vshll.u32 2131351028, %v1469
  %v1479 = vshrl.u32 2102212464, %v1470
  %v1480 = vor.u32 %v1478, %v1479
  %v1481 = vshll.u32 2102212464, %v1469
  %v1482 = vshrl.u32 920167782, %v1470
  %v1483 = vor.u32 %v1481, %v1482
  %v1484 = vshll.u32 920167782, %v1469
  %v1485 = vshrl.u32 1326507024, %v1470
  %v1486 = vor.u32 %v1484, %v1485
  %vm1487 = vcmp.lt.s32.totalorder %v1468, 1
  %vm1488 = vcmp.lt.s32.totalorder %v1468, 2
  %vm1489 = vcmp.lt.s32.totalorder %v1468, 3
  %vm1490 = vcmp.lt.s32.totalorder %v1468, 4
  %v1491 = vsel %vm1487, %v1471, %v1474
  %v1492 = vsel %vm1490, %v1480, 2102212464
  %v1493 = vsel %vm1489, %v1477, %v1492
  %v1494 = vsel %vm1488, %v1491, %v1493
  %v1495 = vsel %vm1487, %v1474, %v1477
  %v1496 = vsel %vm1490, %v1483, 920167782
  %v1497 = vsel %vm1489, %v1480, %v1496
  %v1498 = vsel %vm1488, %v1495, %v1497
  %v1499 = vsel %vm1487, %v1477, %v1480
  %v1500 = vsel %vm1490, %v1486, 1326507024
  %v1501 = vsel %vm1489, %v1483, %v1500
  %v1502 = vsel %vm1488, %v1499, %v1501
  %v1503 = vshll.u32 %v1463, 8
  %v1504 = vmul.u32.u64.compose %v1503, %v1502
  %v1505 = vextract.low.u32 %v1504
  %v1506 = vextract.high.u32 %v1504
  %v1507 = vmul.u32.u64.compose %v1503, %v1498
  %v1508 = vextract.low.u32 %v1507
  %v1509 = vextract.high.u32 %v1507
  %v1510 = vmul.u32 %v1503, %v1494
  %v1511 = vadd.s32 %v1506, %v1508
  %vm1512 = vc.u32 %v1506, %v1508
  %v1513 = vadd.s32 %v1509, 1
  %v1514 = vsel %vm1512, %v1513, %v1509
  %v1515 = vadd.s32 %v1510, %v1514
  %v1516 = vadd.s32 %v1515, 536870912
  %v1517 = vshrl.u32 %v1516, 30
  %v1518 = vshll.u32 %v1517, 30
  %v1519 = vsub.s32 %v1515, %v1518
  %vm1520 = vcmp.lt.s32.totalorder %v1519, 0
  %v1521 = vsub.s32 0, %v1519
  %v1522 = vsel %vm1520, %v1521, %v1519
  %v1523 = vclz %v1522
  %v1524 = vsub.s32 %v1523, 2
  %vm1525 = vcmp.gt.s32.totalorder 0, %v1524
  %v1526 = vsel %vm1525, 0, %v1524
  %v1527 = vsub.s32 32, %v1526
  %v1528 = vshll.u32 %v1519, %v1526
  %v1529 = vshrl.u32 %v1511, %v1527
  %v1530 = vor.u32 %v1528, %v1529
  %v1531 = vsub.s32 4294967266, %v1526
  %v1532 = vadd.s32 %v1531, 127
  %v1533 = vshll.u32 %v1532, 23
  %v1534 = vor.u32 4788187, %v1533
  %v1535 = vand.u32 2147483647, %v1534
  %v1537 = vcvt.s32.f32 %v1530
  %v1538 = vmul.f32 %v1537, %v1535
  %v1539 = vxor.u32 %v1538, 2147483648
  %v1540 = vsel %vm1457, %v1539, %v1538
  %v1541 = vsub.s32 4, %v1517
  %v1542 = vsel %vm1457, %v1541, %v1517
  %v1543 = vsel %vm1456, %v292, %v1540
  %v1544 = vsel %vm1456, 0, %v1542
  %v1545 = vcosq.f32.pop %v1543
  %v1546 = vsinq.f32.pop %v1543
  %vm1547 = vweird.f32 %v292
  %v1548 = vadd.s32 %v1544, 3
  %v1549 = vand.u32 %v1548, 3
  %vm1550 = vcmp.lt.s32.totalorder %v1549, 2
  %vm1551 = vcmp.eq.s32.totalorder %v1549, 0
  %v1552 = vxor.u32 %v1546, 2147483648
  %v1553 = vsel %vm1551, %v1545, %v1552
  %vm1554 = vcmp.eq.s32.totalorder %v1549, 2
  %v1555 = vxor.u32 %v1545, 2147483648
  %v1556 = vsel %vm1554, %v1555, %v1546
  %v1557 = vsel %vm1550, %v1553, %v1556
  %v1558 = vsel %vm1547, nan, %v1557
  %v1559 = vand.u32 2147483647, %v297
  %vm1560 = vcmp.le.f32.partialorder %v1559, 0.7853982
  %vm1561 = vcmp.lt.s32.totalorder %v297, 0
  %v1562 = vand.u32 %v297, 2139095040
  %v1563 = vshrl.u32 %v1562, 23
  %v1564 = vsub.s32 %v1563, 127
  %v1565 = vand.u32 2147483647, %v297
  %v1566 = vand.u32 %v1565, 8388607
  %v1567 = vor.u32 %v1566, 8388608
  %v1568 = vsub.s32 0, %v1567
  %v1569 = vadd.s32 %v1564, 1
  %vm1570 = vcmp.gt.s32.totalorder %v1569, 0
  %v1571 = vsel %vm1570, %v1569, 0
  %v1572 = vshrl.u32 %v1571, 5
  %v1573 = vand.u32 %v1571, 31
  %v1574 = vsub.s32 32, %v1573
  %v1575 = vshrl.u32 683565275, %v1574
  %v1576 = vshll.u32 683565275, %v1573
  %v1577 = vshrl.u32 2475754826, %v1574
  %v1578 = vor.u32 %v1576, %v1577
  %v1579 = vshll.u32 2475754826, %v1573
  %v1580 = vshrl.u32 2131351028, %v1574
  %v1581 = vor.u32 %v1579, %v1580
  %v1582 = vshll.u32 2131351028, %v1573
  %v1583 = vshrl.u32 2102212464, %v1574
  %v1584 = vor.u32 %v1582, %v1583
  %v1585 = vshll.u32 2102212464, %v1573
  %v1586 = vshrl.u32 920167782, %v1574
  %v1587 = vor.u32 %v1585, %v1586
  %v1588 = vshll.u32 920167782, %v1573
  %v1589 = vshrl.u32 1326507024, %v1574
  %v1590 = vor.u32 %v1588, %v1589
  %vm1591 = vcmp.lt.s32.totalorder %v1572, 1
  %vm1592 = vcmp.lt.s32.totalorder %v1572, 2
  %vm1593 = vcmp.lt.s32.totalorder %v1572, 3
  %vm1594 = vcmp.lt.s32.totalorder %v1572, 4
  %v1595 = vsel %vm1591, %v1575, %v1578
  %v1596 = vsel %vm1594, %v1584, 2102212464
  %v1597 = vsel %vm1593, %v1581, %v1596
  %v1598 = vsel %vm1592, %v1595, %v1597
  %v1599 = vsel %vm1591, %v1578, %v1581
  %v1600 = vsel %vm1594, %v1587, 920167782
  %v1601 = vsel %vm1593, %v1584, %v1600
  %v1602 = vsel %vm1592, %v1599, %v1601
  %v1603 = vsel %vm1591, %v1581, %v1584
  %v1604 = vsel %vm1594, %v1590, 1326507024
  %v1605 = vsel %vm1593, %v1587, %v1604
  %v1606 = vsel %vm1592, %v1603, %v1605
  %v1607 = vshll.u32 %v1567, 8
  %v1608 = vmul.u32.u64.compose %v1607, %v1606
  %v1609 = vextract.low.u32 %v1608
  %v1610 = vextract.high.u32 %v1608
  %v1611 = vmul.u32.u64.compose %v1607, %v1602
  %v1612 = vextract.low.u32 %v1611
  %v1613 = vextract.high.u32 %v1611
  %v1614 = vmul.u32 %v1607, %v1598
  %v1615 = vadd.s32 %v1610, %v1612
  %vm1616 = vc.u32 %v1610, %v1612
  %v1617 = vadd.s32 %v1613, 1
  %v1618 = vsel %vm1616, %v1617, %v1613
  %v1619 = vadd.s32 %v1614, %v1618
  %v1620 = vadd.s32 %v1619, 536870912
  %v1621 = vshrl.u32 %v1620, 30
  %v1622 = vshll.u32 %v1621, 30
  %v1623 = vsub.s32 %v1619, %v1622
  %vm1624 = vcmp.lt.s32.totalorder %v1623, 0
  %v1625 = vsub.s32 0, %v1623
  %v1626 = vsel %vm1624, %v1625, %v1623
  %v1627 = vclz %v1626
  %v1628 = vsub.s32 %v1627, 2
  %vm1629 = vcmp.gt.s32.totalorder 0, %v1628
  %v1630 = vsel %vm1629, 0, %v1628
  %v1631 = vsub.s32 32, %v1630
  %v1632 = vshll.u32 %v1623, %v1630
  %v1633 = vshrl.u32 %v1615, %v1631
  %v1634 = vor.u32 %v1632, %v1633
  %v1635 = vsub.s32 4294967266, %v1630
  %v1636 = vadd.s32 %v1635, 127
  %v1637 = vshll.u32 %v1636, 23
  %v1638 = vor.u32 4788187, %v1637
  %v1639 = vand.u32 2147483647, %v1638
  %v1641 = vcvt.s32.f32 %v1634
  %v1642 = vmul.f32 %v1641, %v1639
  %v1643 = vxor.u32 %v1642, 2147483648
  %v1644 = vsel %vm1561, %v1643, %v1642
  %v1645 = vsub.s32 4, %v1621
  %v1646 = vsel %vm1561, %v1645, %v1621
  %v1647 = vsel %vm1560, %v297, %v1644
  %v1648 = vsel %vm1560, 0, %v1646
  %v1649 = vcosq.f32.pop %v1647
  %v1650 = vsinq.f32.pop %v1647
  %vm1651 = vweird.f32 %v297
  %v1652 = vadd.s32 %v1648, 3
  %v1653 = vand.u32 %v1652, 3
  %vm1654 = vcmp.lt.s32.totalorder %v1653, 2
  %vm1655 = vcmp.eq.s32.totalorder %v1653, 0
  %v1656 = vxor.u32 %v1650, 2147483648
  %v1657 = vsel %vm1655, %v1649, %v1656
  %vm1658 = vcmp.eq.s32.totalorder %v1653, 2
  %v1659 = vxor.u32 %v1649, 2147483648
  %v1660 = vsel %vm1658, %v1659, %v1650
  %v1661 = vsel %vm1654, %v1657, %v1660
  %v1662 = vsel %vm1651, nan, %v1661
  %v1663 = vand.u32 2147483647, %v300
  %vm1664 = vcmp.le.f32.partialorder %v1663, 0.7853982
  %vm1665 = vcmp.lt.s32.totalorder %v300, 0
  %v1666 = vand.u32 %v300, 2139095040
  %v1667 = vshrl.u32 %v1666, 23
  %v1668 = vsub.s32 %v1667, 127
  %v1669 = vand.u32 2147483647, %v300
  %v1670 = vand.u32 %v1669, 8388607
  %v1671 = vor.u32 %v1670, 8388608
  %v1672 = vsub.s32 0, %v1671
  %v1673 = vadd.s32 %v1668, 1
  %vm1674 = vcmp.gt.s32.totalorder %v1673, 0
  %v1675 = vsel %vm1674, %v1673, 0
  %v1676 = vshrl.u32 %v1675, 5
  %v1677 = vand.u32 %v1675, 31
  %v1678 = vsub.s32 32, %v1677
  %v1679 = vshrl.u32 683565275, %v1678
  %v1680 = vshll.u32 683565275, %v1677
  %v1681 = vshrl.u32 2475754826, %v1678
  %v1682 = vor.u32 %v1680, %v1681
  %v1683 = vshll.u32 2475754826, %v1677
  %v1684 = vshrl.u32 2131351028, %v1678
  %v1685 = vor.u32 %v1683, %v1684
  %v1686 = vshll.u32 2131351028, %v1677
  %v1687 = vshrl.u32 2102212464, %v1678
  %v1688 = vor.u32 %v1686, %v1687
  %v1689 = vshll.u32 2102212464, %v1677
  %v1690 = vshrl.u32 920167782, %v1678
  %v1691 = vor.u32 %v1689, %v1690
  %v1692 = vshll.u32 920167782, %v1677
  %v1693 = vshrl.u32 1326507024, %v1678
  %v1694 = vor.u32 %v1692, %v1693
  %vm1695 = vcmp.lt.s32.totalorder %v1676, 1
  %vm1696 = vcmp.lt.s32.totalorder %v1676, 2
  %vm1697 = vcmp.lt.s32.totalorder %v1676, 3
  %vm1698 = vcmp.lt.s32.totalorder %v1676, 4
  %v1699 = vsel %vm1695, %v1679, %v1682
  %v1700 = vsel %vm1698, %v1688, 2102212464
  %v1701 = vsel %vm1697, %v1685, %v1700
  %v1702 = vsel %vm1696, %v1699, %v1701
  %v1703 = vsel %vm1695, %v1682, %v1685
  %v1704 = vsel %vm1698, %v1691, 920167782
  %v1705 = vsel %vm1697, %v1688, %v1704
  %v1706 = vsel %vm1696, %v1703, %v1705
  %v1707 = vsel %vm1695, %v1685, %v1688
  %v1708 = vsel %vm1698, %v1694, 1326507024
  %v1709 = vsel %vm1697, %v1691, %v1708
  %v1710 = vsel %vm1696, %v1707, %v1709
  %v1711 = vshll.u32 %v1671, 8
  %v1712 = vmul.u32.u64.compose %v1711, %v1710
  %v1713 = vextract.low.u32 %v1712
  %v1714 = vextract.high.u32 %v1712
  %v1715 = vmul.u32.u64.compose %v1711, %v1706
  %v1716 = vextract.low.u32 %v1715
  %v1717 = vextract.high.u32 %v1715
  %v1718 = vmul.u32 %v1711, %v1702
  %v1719 = vadd.s32 %v1714, %v1716
  %vm1720 = vc.u32 %v1714, %v1716
  %v1721 = vadd.s32 %v1717, 1
  %v1722 = vsel %vm1720, %v1721, %v1717
  %v1723 = vadd.s32 %v1718, %v1722
  %v1724 = vadd.s32 %v1723, 536870912
  %v1725 = vshrl.u32 %v1724, 30
  %v1726 = vshll.u32 %v1725, 30
  %v1727 = vsub.s32 %v1723, %v1726
  %vm1728 = vcmp.lt.s32.totalorder %v1727, 0
  %v1729 = vsub.s32 0, %v1727
  %v1730 = vsel %vm1728, %v1729, %v1727
  %v1731 = vclz %v1730
  %v1732 = vsub.s32 %v1731, 2
  %vm1733 = vcmp.gt.s32.totalorder 0, %v1732
  %v1734 = vsel %vm1733, 0, %v1732
  %v1735 = vsub.s32 32, %v1734
  %v1736 = vshll.u32 %v1727, %v1734
  %v1737 = vshrl.u32 %v1719, %v1735
  %v1738 = vor.u32 %v1736, %v1737
  %v1739 = vsub.s32 4294967266, %v1734
  %v1740 = vadd.s32 %v1739, 127
  %v1741 = vshll.u32 %v1740, 23
  %v1742 = vor.u32 4788187, %v1741
  %v1743 = vand.u32 2147483647, %v1742
  %v1745 = vcvt.s32.f32 %v1738
  %v1746 = vmul.f32 %v1745, %v1743
  %v1747 = vxor.u32 %v1746, 2147483648
  %v1748 = vsel %vm1665, %v1747, %v1746
  %v1749 = vsub.s32 4, %v1725
  %v1750 = vsel %vm1665, %v1749, %v1725
  %v1751 = vsel %vm1664, %v300, %v1748
  %v1752 = vsel %vm1664, 0, %v1750
  %v1753 = vcosq.f32.pop %v1751
  %v1754 = vsinq.f32.pop %v1751
  %vm1755 = vweird.f32 %v300
  %v1756 = vadd.s32 %v1752, 3
  %v1757 = vand.u32 %v1756, 3
  %vm1758 = vcmp.lt.s32.totalorder %v1757, 2
  %vm1759 = vcmp.eq.s32.totalorder %v1757, 0
  %v1760 = vxor.u32 %v1754, 2147483648
  %v1761 = vsel %vm1759, %v1753, %v1760
  %vm1762 = vcmp.eq.s32.totalorder %v1757, 2
  %v1763 = vxor.u32 %v1753, 2147483648
  %v1764 = vsel %vm1762, %v1763, %v1754
  %v1765 = vsel %vm1758, %v1761, %v1764
  %v1766 = vsel %vm1755, nan, %v1765
  %v1767 = vand.u32 2147483647, %v305
  %vm1768 = vcmp.le.f32.partialorder %v1767, 0.7853982
  %vm1769 = vcmp.lt.s32.totalorder %v305, 0
  %v1770 = vand.u32 %v305, 2139095040
  %v1771 = vshrl.u32 %v1770, 23
  %v1772 = vsub.s32 %v1771, 127
  %v1773 = vand.u32 2147483647, %v305
  %v1774 = vand.u32 %v1773, 8388607
  %v1775 = vor.u32 %v1774, 8388608
  %v1776 = vsub.s32 0, %v1775
  %v1777 = vadd.s32 %v1772, 1
  %vm1778 = vcmp.gt.s32.totalorder %v1777, 0
  %v1779 = vsel %vm1778, %v1777, 0
  %v1780 = vshrl.u32 %v1779, 5
  %v1781 = vand.u32 %v1779, 31
  %v1782 = vsub.s32 32, %v1781
  %v1783 = vshrl.u32 683565275, %v1782
  %v1784 = vshll.u32 683565275, %v1781
  %v1785 = vshrl.u32 2475754826, %v1782
  %v1786 = vor.u32 %v1784, %v1785
  %v1787 = vshll.u32 2475754826, %v1781
  %v1788 = vshrl.u32 2131351028, %v1782
  %v1789 = vor.u32 %v1787, %v1788
  %v1790 = vshll.u32 2131351028, %v1781
  %v1791 = vshrl.u32 2102212464, %v1782
  %v1792 = vor.u32 %v1790, %v1791
  %v1793 = vshll.u32 2102212464, %v1781
  %v1794 = vshrl.u32 920167782, %v1782
  %v1795 = vor.u32 %v1793, %v1794
  %v1796 = vshll.u32 920167782, %v1781
  %v1797 = vshrl.u32 1326507024, %v1782
  %v1798 = vor.u32 %v1796, %v1797
  %vm1799 = vcmp.lt.s32.totalorder %v1780, 1
  %vm1800 = vcmp.lt.s32.totalorder %v1780, 2
  %vm1801 = vcmp.lt.s32.totalorder %v1780, 3
  %vm1802 = vcmp.lt.s32.totalorder %v1780, 4
  %v1803 = vsel %vm1799, %v1783, %v1786
  %v1804 = vsel %vm1802, %v1792, 2102212464
  %v1805 = vsel %vm1801, %v1789, %v1804
  %v1806 = vsel %vm1800, %v1803, %v1805
  %v1807 = vsel %vm1799, %v1786, %v1789
  %v1808 = vsel %vm1802, %v1795, 920167782
  %v1809 = vsel %vm1801, %v1792, %v1808
  %v1810 = vsel %vm1800, %v1807, %v1809
  %v1811 = vsel %vm1799, %v1789, %v1792
  %v1812 = vsel %vm1802, %v1798, 1326507024
  %v1813 = vsel %vm1801, %v1795, %v1812
  %v1814 = vsel %vm1800, %v1811, %v1813
  %v1815 = vshll.u32 %v1775, 8
  %v1816 = vmul.u32.u64.compose %v1815, %v1814
  %v1817 = vextract.low.u32 %v1816
  %v1818 = vextract.high.u32 %v1816
  %v1819 = vmul.u32.u64.compose %v1815, %v1810
  %v1820 = vextract.low.u32 %v1819
  %v1821 = vextract.high.u32 %v1819
  %v1822 = vmul.u32 %v1815, %v1806
  %v1823 = vadd.s32 %v1818, %v1820
  %vm1824 = vc.u32 %v1818, %v1820
  %v1825 = vadd.s32 %v1821, 1
  %v1826 = vsel %vm1824, %v1825, %v1821
  %v1827 = vadd.s32 %v1822, %v1826
  %v1828 = vadd.s32 %v1827, 536870912
  %v1829 = vshrl.u32 %v1828, 30
  %v1830 = vshll.u32 %v1829, 30
  %v1831 = vsub.s32 %v1827, %v1830
  %vm1832 = vcmp.lt.s32.totalorder %v1831, 0
  %v1833 = vsub.s32 0, %v1831
  %v1834 = vsel %vm1832, %v1833, %v1831
  %v1835 = vclz %v1834
  %v1836 = vsub.s32 %v1835, 2
  %vm1837 = vcmp.gt.s32.totalorder 0, %v1836
  %v1838 = vsel %vm1837, 0, %v1836
  %v1839 = vsub.s32 32, %v1838
  %v1840 = vshll.u32 %v1831, %v1838
  %v1841 = vshrl.u32 %v1823, %v1839
  %v1842 = vor.u32 %v1840, %v1841
  %v1843 = vsub.s32 4294967266, %v1838
  %v1844 = vadd.s32 %v1843, 127
  %v1845 = vshll.u32 %v1844, 23
  %v1846 = vor.u32 4788187, %v1845
  %v1847 = vand.u32 2147483647, %v1846
  %v1849 = vcvt.s32.f32 %v1842
  %v1850 = vmul.f32 %v1849, %v1847
  %v1851 = vxor.u32 %v1850, 2147483648
  %v1852 = vsel %vm1769, %v1851, %v1850
  %v1853 = vsub.s32 4, %v1829
  %v1854 = vsel %vm1769, %v1853, %v1829
  %v1855 = vsel %vm1768, %v305, %v1852
  %v1856 = vsel %vm1768, 0, %v1854
  %v1857 = vcosq.f32.pop %v1855
  %v1858 = vsinq.f32.pop %v1855
  %vm1859 = vweird.f32 %v305
  %v1860 = vadd.s32 %v1856, 3
  %v1861 = vand.u32 %v1860, 3
  %vm1862 = vcmp.lt.s32.totalorder %v1861, 2
  %vm1863 = vcmp.eq.s32.totalorder %v1861, 0
  %v1864 = vxor.u32 %v1858, 2147483648
  %v1865 = vsel %vm1863, %v1857, %v1864
  %vm1866 = vcmp.eq.s32.totalorder %v1861, 2
  %v1867 = vxor.u32 %v1857, 2147483648
  %v1868 = vsel %vm1866, %v1867, %v1858
  %v1869 = vsel %vm1862, %v1865, %v1868
  %v1870 = vsel %vm1859, nan, %v1869
  %v1871 = vand.u32 2147483647, %v308
  %vm1872 = vcmp.le.f32.partialorder %v1871, 0.7853982
  %vm1873 = vcmp.lt.s32.totalorder %v308, 0
  %v1874 = vand.u32 %v308, 2139095040
  %v1875 = vshrl.u32 %v1874, 23
  %v1876 = vsub.s32 %v1875, 127
  %v1877 = vand.u32 2147483647, %v308
  %v1878 = vand.u32 %v1877, 8388607
  %v1879 = vor.u32 %v1878, 8388608
  %v1880 = vsub.s32 0, %v1879
  %v1881 = vadd.s32 %v1876, 1
  %vm1882 = vcmp.gt.s32.totalorder %v1881, 0
  %v1883 = vsel %vm1882, %v1881, 0
  %v1884 = vshrl.u32 %v1883, 5
  %v1885 = vand.u32 %v1883, 31
  %v1886 = vsub.s32 32, %v1885
  %v1887 = vshrl.u32 683565275, %v1886
  %v1888 = vshll.u32 683565275, %v1885
  %v1889 = vshrl.u32 2475754826, %v1886
  %v1890 = vor.u32 %v1888, %v1889
  %v1891 = vshll.u32 2475754826, %v1885
  %v1892 = vshrl.u32 2131351028, %v1886
  %v1893 = vor.u32 %v1891, %v1892
  %v1894 = vshll.u32 2131351028, %v1885
  %v1895 = vshrl.u32 2102212464, %v1886
  %v1896 = vor.u32 %v1894, %v1895
  %v1897 = vshll.u32 2102212464, %v1885
  %v1898 = vshrl.u32 920167782, %v1886
  %v1899 = vor.u32 %v1897, %v1898
  %v1900 = vshll.u32 920167782, %v1885
  %v1901 = vshrl.u32 1326507024, %v1886
  %v1902 = vor.u32 %v1900, %v1901
  %vm1903 = vcmp.lt.s32.totalorder %v1884, 1
  %vm1904 = vcmp.lt.s32.totalorder %v1884, 2
  %vm1905 = vcmp.lt.s32.totalorder %v1884, 3
  %vm1906 = vcmp.lt.s32.totalorder %v1884, 4
  %v1907 = vsel %vm1903, %v1887, %v1890
  %v1908 = vsel %vm1906, %v1896, 2102212464
  %v1909 = vsel %vm1905, %v1893, %v1908
  %v1910 = vsel %vm1904, %v1907, %v1909
  %v1911 = vsel %vm1903, %v1890, %v1893
  %v1912 = vsel %vm1906, %v1899, 920167782
  %v1913 = vsel %vm1905, %v1896, %v1912
  %v1914 = vsel %vm1904, %v1911, %v1913
  %v1915 = vsel %vm1903, %v1893, %v1896
  %v1916 = vsel %vm1906, %v1902, 1326507024
  %v1917 = vsel %vm1905, %v1899, %v1916
  %v1918 = vsel %vm1904, %v1915, %v1917
  %v1919 = vshll.u32 %v1879, 8
  %v1920 = vmul.u32.u64.compose %v1919, %v1918
  %v1921 = vextract.low.u32 %v1920
  %v1922 = vextract.high.u32 %v1920
  %v1923 = vmul.u32.u64.compose %v1919, %v1914
  %v1924 = vextract.low.u32 %v1923
  %v1925 = vextract.high.u32 %v1923
  %v1926 = vmul.u32 %v1919, %v1910
  %v1927 = vadd.s32 %v1922, %v1924
  %vm1928 = vc.u32 %v1922, %v1924
  %v1929 = vadd.s32 %v1925, 1
  %v1930 = vsel %vm1928, %v1929, %v1925
  %v1931 = vadd.s32 %v1926, %v1930
  %v1932 = vadd.s32 %v1931, 536870912
  %v1933 = vshrl.u32 %v1932, 30
  %v1934 = vshll.u32 %v1933, 30
  %v1935 = vsub.s32 %v1931, %v1934
  %vm1936 = vcmp.lt.s32.totalorder %v1935, 0
  %v1937 = vsub.s32 0, %v1935
  %v1938 = vsel %vm1936, %v1937, %v1935
  %v1939 = vclz %v1938
  %v1940 = vsub.s32 %v1939, 2
  %vm1941 = vcmp.gt.s32.totalorder 0, %v1940
  %v1942 = vsel %vm1941, 0, %v1940
  %v1943 = vsub.s32 32, %v1942
  %v1944 = vshll.u32 %v1935, %v1942
  %v1945 = vshrl.u32 %v1927, %v1943
  %v1946 = vor.u32 %v1944, %v1945
  %v1947 = vsub.s32 4294967266, %v1942
  %v1948 = vadd.s32 %v1947, 127
  %v1949 = vshll.u32 %v1948, 23
  %v1950 = vor.u32 4788187, %v1949
  %v1951 = vand.u32 2147483647, %v1950
  %v1953 = vcvt.s32.f32 %v1946
  %v1954 = vmul.f32 %v1953, %v1951
  %v1955 = vxor.u32 %v1954, 2147483648
  %v1956 = vsel %vm1873, %v1955, %v1954
  %v1957 = vsub.s32 4, %v1933
  %v1958 = vsel %vm1873, %v1957, %v1933
  %v1959 = vsel %vm1872, %v308, %v1956
  %v1960 = vsel %vm1872, 0, %v1958
  %v1961 = vcosq.f32.pop %v1959
  %v1962 = vsinq.f32.pop %v1959
  %vm1963 = vweird.f32 %v308
  %v1964 = vadd.s32 %v1960, 3
  %v1965 = vand.u32 %v1964, 3
  %vm1966 = vcmp.lt.s32.totalorder %v1965, 2
  %vm1967 = vcmp.eq.s32.totalorder %v1965, 0
  %v1968 = vxor.u32 %v1962, 2147483648
  %v1969 = vsel %vm1967, %v1961, %v1968
  %vm1970 = vcmp.eq.s32.totalorder %v1965, 2
  %v1971 = vxor.u32 %v1961, 2147483648
  %v1972 = vsel %vm1970, %v1971, %v1962
  %v1973 = vsel %vm1966, %v1969, %v1972
  %v1974 = vsel %vm1963, nan, %v1973
  %v1975 = vpack.c.bf16 %v518, %v414
  %v1976 = vpack.c.bf16 %v726, %v622
  %v1977 = vpack.c.bf16 %v934, %v830
  %v1978 = vpack.c.bf16 %v1142, %v1038
  %v1979 = vpack.c.bf16 %v1350, %v1246
  %v1980 = vpack.c.bf16 %v1558, %v1454
  %v1981 = vpack.c.bf16 %v1766, %v1662
  %v1982 = vpack.c.bf16 %v1974, %v1870
  %v1983 = vld [vmem:[%s3] sm:$0xf]
  %v1984 = vld [vmem:[%s3 + $0x4] sm:$0xf]
  %v1985 = vld [vmem:[%s3 + $0x8] sm:$0xf]
  %v1986 = vld [vmem:[%s3 + $0xc] sm:$0xf]
  %v1987 = vld [vmem:[%s3 + $0x10] sm:$0xf]
  %v1988 = vld [vmem:[%s3 + $0x14] sm:$0xf]
  %v1989 = vld [vmem:[%s3 + $0x18] sm:$0xf]
  %v1990 = vld [vmem:[%s3 + $0x1c] sm:$0xf]
  %v1991 = vld [vmem:[%s3 + $0x20] sm:$0xf]
  %v1992 = vld [vmem:[%s3 + $0x24] sm:$0xf]
  %v1993 = vld [vmem:[%s3 + $0x28] sm:$0xf]
  %v1994 = vld [vmem:[%s3 + $0x2c] sm:$0xf]
  %v1995 = vld [vmem:[%s3 + $0x30] sm:$0xf]
  %v1996 = vld [vmem:[%s3 + $0x34] sm:$0xf]
  %v1997 = vld [vmem:[%s3 + $0x38] sm:$0xf]
  %v1998 = vld [vmem:[%s3 + $0x3c] sm:$0xf]
  %v1999 = vld [vmem:[%s4] sm:$0xff]
  %v2000 = vld [vmem:[%s4 + $0x8] sm:$0xff]
  %v2001 = vld [vmem:[%s4 + $0x10] sm:$0xff]
  %v2002 = vld [vmem:[%s4 + $0x18] sm:$0xff]
  %v2003 = vld [vmem:[%s4 + $0x20] sm:$0xff]
  %v2004 = vld [vmem:[%s4 + $0x28] sm:$0xff]
  %v2005 = vld [vmem:[%s4 + $0x30] sm:$0xff]
  %v2006 = vld [vmem:[%s4 + $0x38] sm:$0xff]
  %v2007 = vld [vmem:[%s4 + $0x40] sm:$0xff]
  %v2008 = vld [vmem:[%s4 + $0x48] sm:$0xff]
  %v2009 = vld [vmem:[%s4 + $0x50] sm:$0xff]
  %v2010 = vld [vmem:[%s4 + $0x58] sm:$0xff]
  %v2011 = vld [vmem:[%s4 + $0x60] sm:$0xff]
  %v2012 = vld [vmem:[%s4 + $0x68] sm:$0xff]
  %v2013 = vld [vmem:[%s4 + $0x70] sm:$0xff]
  %v2014 = vld [vmem:[%s4 + $0x78] sm:$0xff]
  %2016 = vset.pattern.permute.xlu0 0
  %2017 = vperm.xlu0 %2016, %v1999
  %v2018 = vpop.permute.xlu0 %2017
  %2021 = vset.pattern.permute.xlu0 0
  %2022 = vperm.xlu0 %2021, %v2000
  %v2023 = vpop.permute.xlu0 %2022
  %2026 = vset.pattern.permute.xlu0 0
  %2027 = vperm.xlu0 %2026, %v2001
  %v2028 = vpop.permute.xlu0 %2027
  %2031 = vset.pattern.permute.xlu0 0
  %2032 = vperm.xlu0 %2031, %v2002
  %v2033 = vpop.permute.xlu0 %2032
  %2036 = vset.pattern.permute.xlu0 0
  %2037 = vperm.xlu0 %2036, %v2003
  %v2038 = vpop.permute.xlu0 %2037
  %2041 = vset.pattern.permute.xlu0 0
  %2042 = vperm.xlu0 %2041, %v2004
  %v2043 = vpop.permute.xlu0 %2042
  %2046 = vset.pattern.permute.xlu0 0
  %2047 = vperm.xlu0 %2046, %v2005
  %v2048 = vpop.permute.xlu0 %2047
  %2051 = vset.pattern.permute.xlu0 0
  %2052 = vperm.xlu0 %2051, %v2006
  %v2053 = vpop.permute.xlu0 %2052
  %2056 = vset.pattern.permute.xlu0 0
  %2057 = vperm.xlu0 %2056, %v2007
  %v2058 = vpop.permute.xlu0 %2057
  %2061 = vset.pattern.permute.xlu0 0
  %2062 = vperm.xlu0 %2061, %v2008
  %v2063 = vpop.permute.xlu0 %2062
  %2066 = vset.pattern.permute.xlu0 0
  %2067 = vperm.xlu0 %2066, %v2009
  %v2068 = vpop.permute.xlu0 %2067
  %2071 = vset.pattern.permute.xlu0 0
  %2072 = vperm.xlu0 %2071, %v2010
  %v2073 = vpop.permute.xlu0 %2072
  %2076 = vset.pattern.permute.xlu0 0
  %2077 = vperm.xlu0 %2076, %v2011
  %v2078 = vpop.permute.xlu0 %2077
  %2081 = vset.pattern.permute.xlu0 0
  %2082 = vperm.xlu0 %2081, %v2012
  %v2083 = vpop.permute.xlu0 %2082
  %2086 = vset.pattern.permute.xlu0 0
  %2087 = vperm.xlu0 %2086, %v2013
  %v2088 = vpop.permute.xlu0 %2087
  %2091 = vset.pattern.permute.xlu0 0
  %2092 = vperm.xlu0 %2091, %v2014
  %v2093 = vpop.permute.xlu0 %2092
  %v2111 = vunpack.c.l.b16 %v1983
  %v2112 = vunpack.c.l.b16 %v1984
  %v2113 = vunpack.c.l.b16 %v1985
  %v2114 = vunpack.c.l.b16 %v1986
  %v2115 = vunpack.c.l.b16 %v1987
  %v2116 = vunpack.c.l.b16 %v1988
  %v2117 = vunpack.c.l.b16 %v1989
  %v2118 = vunpack.c.l.b16 %v1990
  %v2119 = vunpack.c.l.b16 %v1991
  %v2120 = vunpack.c.l.b16 %v1992
  %v2121 = vunpack.c.l.b16 %v1993
  %v2122 = vunpack.c.l.b16 %v1994
  %v2123 = vunpack.c.l.b16 %v1995
  %v2124 = vunpack.c.l.b16 %v1996
  %v2125 = vunpack.c.l.b16 %v1997
  %v2126 = vunpack.c.l.b16 %v1998
  %v2127 = vpack.c.b16 %v2112, %v2111
  %v2128 = vpack.c.b16 %v2114, %v2113
  %v2129 = vpack.c.b16 %v2116, %v2115
  %v2130 = vpack.c.b16 %v2118, %v2117
  %v2131 = vpack.c.b16 %v2120, %v2119
  %v2132 = vpack.c.b16 %v2122, %v2121
  %v2133 = vpack.c.b16 %v2124, %v2123
  %v2134 = vpack.c.b16 %v2126, %v2125
  %2143 = vmatprep.subr.bf16.mxu0 0
  %2144 = vmatpush1.bf16.msra.mxu0 %v1975
  %2145 = vmatprep.subr.bf16.mxu0 0
  %2146 = vmatpush1.bf16.msra.mxu0 %v1976
  %2147 = vmatprep.subr.bf16.mxu0 0
  %2148 = vmatpush1.bf16.msra.mxu0 %v1977
  %2149 = vmatprep.subr.bf16.mxu0 0
  %2150 = vmatpush1.bf16.msra.mxu0 %v1978
  %2151 = vmatprep.subr.bf16.mxu0 0
  %2152 = vmatpush1.bf16.msra.mxu0 %v1979
  %2153 = vmatprep.subr.bf16.mxu0 0
  %2154 = vmatpush1.bf16.msra.mxu0 %v1980
  %2155 = vmatprep.subr.bf16.mxu0 0
  %2156 = vmatpush1.bf16.msra.mxu0 %v1981
  %2157 = vmatprep.subr.bf16.mxu0 0
  %2158 = vmatpush1.bf16.msra.mxu0 %v1982
  %2159 = vmatprep.subr.bf16.mxu0 0
  %2160 = vmatpush1.bf16.msra.mxu0 0
  %2161 = vmatprep.subr.bf16.mxu0 0
  %2162 = vmatpush1.bf16.msra.mxu0 0
  %2163 = vmatprep.subr.bf16.mxu0 0
  %2164 = vmatpush1.bf16.msra.mxu0 0
  %2165 = vmatprep.subr.bf16.mxu0 0
  %2166 = vmatpush1.bf16.msra.mxu0 0
  %2167 = vmatprep.subr.bf16.mxu0 0
  %2168 = vmatpush1.bf16.msra.mxu0 0
  %2169 = vmatprep.subr.bf16.mxu0 0
  %2170 = vmatpush1.bf16.msra.mxu0 0
  %2171 = vmatprep.subr.bf16.mxu0 0
  %2172 = vmatpush1.bf16.msra.mxu0 0
  %2173 = vmatprep.subr.bf16.mxu0 0
  %2174 = vmatpush1.bf16.msra.mxu0 0
  %2175 = vmatprep.mubr.bf16.mxu0 0
  %2176 = vmatmul.mubr.bf16.gmra.mrb[0].mxu0 %v2127
  %v2177 = vpop.f32.mrb[0].mxu0
  %v2178 = vadd.f32 %v2018, %v2177
  %v2179 = vpop.f32.mrb[0].mxu0
  %v2180 = vpop.f32.mrb[0].mxu0
  %v2181 = vadd.f32 %v2023, %v2180
  %v2182 = vpop.f32.mrb[0].mxu0
  %2183 = vmatprep.mubr.bf16.mxu0 0
  %2184 = vmatmul.mubr.bf16.gmra.mrb[0].mxu0 %v2128
  %v2185 = vpop.f32.mrb[0].mxu0
  %v2186 = vadd.f32 %v2028, %v2185
  %v2187 = vpop.f32.mrb[0].mxu0
  %v2188 = vpop.f32.mrb[0].mxu0
  %v2189 = vadd.f32 %v2033, %v2188
  %v2190 = vpop.f32.mrb[0].mxu0
  %2191 = vmatprep.mubr.bf16.mxu0 0
  %2192 = vmatmul.mubr.bf16.gmra.mrb[0].mxu0 %v2129
  %v2193 = vpop.f32.mrb[0].mxu0
  %v2194 = vadd.f32 %v2038, %v2193
  %v2195 = vpop.f32.mrb[0].mxu0
  %v2196 = vpop.f32.mrb[0].mxu0
  %v2197 = vadd.f32 %v2043, %v2196
  %v2198 = vpop.f32.mrb[0].mxu0
  %2199 = vmatprep.mubr.bf16.mxu0 0
  %2200 = vmatmul.mubr.bf16.gmra.mrb[0].mxu0 %v2130
  %v2201 = vpop.f32.mrb[0].mxu0
  %v2202 = vadd.f32 %v2048, %v2201
  %v2203 = vpop.f32.mrb[0].mxu0
  %v2204 = vpop.f32.mrb[0].mxu0
  %v2205 = vadd.f32 %v2053, %v2204
  %v2206 = vpop.f32.mrb[0].mxu0
  %2207 = vmatprep.mubr.bf16.mxu0 0
  %2208 = vmatmul.mubr.bf16.gmra.mrb[0].mxu0 %v2131
  %v2209 = vpop.f32.mrb[0].mxu0
  %v2210 = vadd.f32 %v2058, %v2209
  %v2211 = vpop.f32.mrb[0].mxu0
  %v2212 = vpop.f32.mrb[0].mxu0
  %v2213 = vadd.f32 %v2063, %v2212
  %v2214 = vpop.f32.mrb[0].mxu0
  %2215 = vmatprep.mubr.bf16.mxu0 0
  %2216 = vmatmul.mubr.bf16.gmra.mrb[0].mxu0 %v2132
  %v2217 = vpop.f32.mrb[0].mxu0
  %v2218 = vadd.f32 %v2068, %v2217
  %v2219 = vpop.f32.mrb[0].mxu0
  %v2220 = vpop.f32.mrb[0].mxu0
  %v2221 = vadd.f32 %v2073, %v2220
  %v2222 = vpop.f32.mrb[0].mxu0
  %2223 = vmatprep.mubr.bf16.mxu0 0
  %2224 = vmatmul.mubr.bf16.gmra.mrb[0].mxu0 %v2133
  %v2225 = vpop.f32.mrb[0].mxu0
  %v2226 = vadd.f32 %v2078, %v2225
  %v2227 = vpop.f32.mrb[0].mxu0
  %v2228 = vpop.f32.mrb[0].mxu0
  %v2229 = vadd.f32 %v2083, %v2228
  %v2230 = vpop.f32.mrb[0].mxu0
  %2231 = vmatprep.mubr.bf16.mxu0 0
  %2232 = vmatmul.mubr.bf16.gmra.mrb[0].mxu0 %v2134
  %v2233 = vpop.f32.mrb[0].mxu0
  %v2234 = vadd.f32 %v2088, %v2233
  %v2235 = vpop.f32.mrb[0].mxu0
  %v2236 = vpop.f32.mrb[0].mxu0
  %v2237 = vadd.f32 %v2093, %v2236
  %v2238 = vpop.f32.mrb[0].mxu0
  %2239 = vdwg.mxu0
  %2240 = vst [vmem:[%s5] sm:$0xff] %v2178
  %2241 = vst [vmem:[%s5 + $0x8] sm:$0xff] %v2181
  %2242 = vst [vmem:[%s5 + $0x10] sm:$0xff] %v2186
  %2243 = vst [vmem:[%s5 + $0x18] sm:$0xff] %v2189
  %2244 = vst [vmem:[%s5 + $0x20] sm:$0xff] %v2194
  %2245 = vst [vmem:[%s5 + $0x28] sm:$0xff] %v2197
  %2246 = vst [vmem:[%s5 + $0x30] sm:$0xff] %v2202
  %2247 = vst [vmem:[%s5 + $0x38] sm:$0xff] %v2205
  %2248 = vst [vmem:[%s5 + $0x40] sm:$0xff] %v2210
  %2249 = vst [vmem:[%s5 + $0x48] sm:$0xff] %v2213
  %2250 = vst [vmem:[%s5 + $0x50] sm:$0xff] %v2218
  %2251 = vst [vmem:[%s5 + $0x58] sm:$0xff] %v2221
  %2252 = vst [vmem:[%s5 + $0x60] sm:$0xff] %v2226
  %2253 = vst [vmem:[%s5 + $0x68] sm:$0xff] %v2229
  %2254 = vst [vmem:[%s5 + $0x70] sm:$0xff] %v2234
  %2255 = vst [vmem:[%s5 + $0x78] sm:$0xff] %v2237
  // Predicated region
  $region22: #{generate_filters.1} parent=0 // pred_check
    _
  $region23: #{generate_filters.1} parent=0 // pred_check_branch
    %2257 = sbr.rel (0) target = $region25
  $region24: #{generate_filters.1} parent=0 // pred_region
    _
  $region25: #{generate_filters.1} parent=0 // pred_fallthru
    _
  // Predicated region
  $region26: #{generate_filters.1} parent=0 // pred_check
    _
  $region27: #{generate_filters.1} parent=0 // pred_check_branch
    %2259 = sbr.rel (0) target = $region29
  $region28: #{generate_filters.1} parent=0 // pred_region
    _
  $region29: #{generate_filters.1} parent=0 // pred_fallthru
    _

</llo_original>
